<compile_context>
chip_gen: v6e
topology: v6e:2x2x1
jax: 0.10.0
libtpu: 0.0.40
codegen_flags: <defaults>
</compile_context>

<pallas_src>
import math
import functools

import jax
import jax.numpy as jnp
from jax.experimental import pallas as pl
from jax.experimental.pallas import tpu as pltpu

LN_EPS = 1e-5                      # PyTorch nn.LayerNorm default
MATMUL_DTYPE = jnp.bfloat16        # MXU operand dtype (set to jnp.float32 for bit-closer parity)
NEG_INF = -1e30                    # additive mask bias (probabilities -> 0, like masked_fill(-1e20))


# ----------------------------------------------------------------------------
# Shared in-kernel helpers
# ----------------------------------------------------------------------------
def _layernorm(x, gamma, beta):
    mean = jnp.mean(x, axis=-1, keepdims=True)
    cent = x - mean
    var = jnp.mean(cent * cent, axis=-1, keepdims=True)
    return cent * jax.lax.rsqrt(var + LN_EPS) * gamma + beta


def _mha_ln_core(q2d, k2d, v2d, bias, wo3, bo, residual, gamma, beta, out_ref,
                 *, heads, head_dim):
    """Multi-head attention on projected q/k/v + fc_out + residual + LayerNorm."""
    md = MATMUL_DTYPE
    inv = jnp.float32(1.0 / math.sqrt(head_dim))
    q2d = (q2d * inv).astype(md)          # fold 1/sqrt(hd) into Q (once, full width)
    k2d = k2d.astype(md)
    v2d = v2d.astype(md)

    def split_heads(a):                   # (S, E) -> (H, S, hd): lane slices + leading-axis stack
        return jnp.stack([a[:, h * head_dim:(h + 1) * head_dim] for h in range(heads)], axis=0)

    q3, k3, v3 = split_heads(q2d), split_heads(k2d), split_heads(v2d)

    # Scores for all heads in one batched contraction (no per-head matmul loop).
    s = jnp.einsum('hqd,hkd->hqk', q3, k3, preferred_element_type=jnp.float32)
    if bias is not None:
        s = s + bias[None, :, :]          # additive mask bias, one vectorized add for all heads
    s = s - jnp.max(s, axis=-1, keepdims=True)
    p = jnp.exp(s)
    p = p * pl.reciprocal(jnp.sum(p, axis=-1, keepdims=True), approx=True)

    # Weighted values for all heads, then fc_out: concat_h(o_h) @ Wo == sum_h o_h @ Wo3[h].
    o = jnp.einsum('hqk,hkd->hqd', p.astype(md), v3, preferred_element_type=jnp.float32)
    t = jnp.einsum('hqd,hde->hqe', o.astype(md), wo3.astype(md),
                   preferred_element_type=jnp.float32)
    attn = jnp.sum(t, axis=0) + bo

    # Fused residual + LayerNorm epilogue.
    out_ref[0] = _layernorm(attn + residual, gamma, beta).astype(out_ref.dtype)
    # TODO(synk): for long sequences, tile Sk with an online-softmax (flash-style) loop
    # instead of materializing the full (H, Sq, Sk) score tensor in VMEM.


# ----------------------------------------------------------------------------
# Self-attention (x, x, x) + residual + LayerNorm  — fused (E, 3E) QKV matmul
# ----------------------------------------------------------------------------
def _self_attn_ln_kernel(*refs, heads, head_dim, use_mask):
    if use_mask:
        (x_ref, bias_ref, wqkv_ref, wo3_ref, bo_ref, g_ref, b_ref, out_ref) = refs
    else:
        (x_ref, wqkv_ref, wo3_ref, bo_ref, g_ref, b_ref, out_ref) = refs
    e = heads * head_dim

    x = x_ref[0].astype(jnp.float32)                                  # (S, E)
    qkv = jnp.dot(x.astype(MATMUL_DTYPE), wqkv_ref[...].astype(MATMUL_DTYPE),
                  preferred_element_type=jnp.float32)                 # (S, 3E)
    q2d, k2d, v2d = qkv[:, :e], qkv[:, e:2 * e], qkv[:, 2 * e:3 * e]
    bias = bias_ref[0].astype(jnp.float32) if use_mask else None
    _mha_ln_core(q2d, k2d, v2d, bias, wo3_ref[...], bo_ref[...], x,
                 g_ref[...], b_ref[...], out_ref, heads=heads, head_dim=head_dim)


def self_attention_ln(x, wqkv, wo3, bo, gamma, beta, mask_bias, *, heads):
    n, s, e = x.shape
    hd = e // heads
    use_mask = mask_bias is not None
    kernel = functools.partial(_self_attn_ln_kernel, heads=heads, head_dim=hd,
                               use_mask=use_mask)

    act_spec = pl.BlockSpec((1, s, e), lambda b: (b, 0, 0))
    vec_spec = pl.BlockSpec((1, e), lambda b: (0, 0))

    in_specs = [act_spec]
    args = [x]
    if use_mask:
        in_specs.append(pl.BlockSpec((1, s, s), lambda b: (b, 0, 0)))
        args.append(mask_bias)
    in_specs += [pl.BlockSpec((e, 3 * e), lambda b: (0, 0)),
                 pl.BlockSpec((heads, hd, e), lambda b: (0, 0, 0)),
                 vec_spec, vec_spec, vec_spec]
    args += [wqkv, wo3, bo.reshape(1, e), gamma.reshape(1, e), beta.reshape(1, e)]

    return pl.pallas_call(
        kernel,
        out_shape=jax.ShapeDtypeStruct((n, s, e), x.dtype),
        grid=(n,),
        in_specs=in_specs,
        out_specs=act_spec,
        compiler_params=pltpu.CompilerParams(dimension_semantics=("parallel",)),
    )(*args)


# ----------------------------------------------------------------------------
# Cross-attention (value, key, query differ) + residual + LayerNorm
# ----------------------------------------------------------------------------
def _cross_attn_ln_kernel(*refs, heads, head_dim, use_mask):
    if use_mask:
        (xq_ref, xk_ref, xv_ref, bias_ref,
         wq_ref, wk_ref, wv_ref, wo3_ref, bo_ref, g_ref, b_ref, out_ref) = refs
    else:
        (xq_ref, xk_ref, xv_ref,
         wq_ref, wk_ref, wv_ref, wo3_ref, bo_ref, g_ref, b_ref, out_ref) = refs

    md = MATMUL_DTYPE
    xq = xq_ref[0].astype(jnp.float32)                                # (Sq, E)
    q2d = jnp.dot(xq.astype(md), wq_ref[...].astype(md), preferred_element_type=jnp.float32)
    k2d = jnp.dot(xk_ref[0].astype(md), wk_ref[...].astype(md), preferred_element_type=jnp.float32)
    v2d = jnp.dot(xv_ref[0].astype(md), wv_ref[...].astype(md), preferred_element_type=jnp.float32)
    bias = bias_ref[0].astype(jnp.float32) if use_mask else None
    _mha_ln_core(q2d, k2d, v2d, bias, wo3_ref[...], bo_ref[...], xq,
                 g_ref[...], b_ref[...], out_ref, heads=heads, head_dim=head_dim)


def cross_attention_ln(xq, xk, xv, wq, wk, wv, wo3, bo, gamma, beta, mask_bias, *, heads):
    n, sq, e = xq.shape
    sk = xk.shape[1]
    hd = e // heads
    use_mask = mask_bias is not None
    kernel = functools.partial(_cross_attn_ln_kernel, heads=heads, head_dim=hd,
                               use_mask=use_mask)

    q_spec = pl.BlockSpec((1, sq, e), lambda b: (b, 0, 0))
    kv_spec = pl.BlockSpec((1, sk, e), lambda b: (b, 0, 0))
    w_spec = pl.BlockSpec((e, e), lambda b: (0, 0))
    vec_spec = pl.BlockSpec((1, e), lambda b: (0, 0))

    in_specs = [q_spec, kv_spec, kv_spec]
    args = [xq, xk, xv]
    if use_mask:
        in_specs.append(pl.BlockSpec((1, sq, sk), lambda b: (b, 0, 0)))
        args.append(mask_bias)
    in_specs += [w_spec, w_spec, w_spec,
                 pl.BlockSpec((heads, hd, e), lambda b: (0, 0, 0)),
                 vec_spec, vec_spec, vec_spec]
    args += [wq, wk, wv, wo3, bo.reshape(1, e), gamma.reshape(1, e), beta.reshape(1, e)]

    return pl.pallas_call(
        kernel,
        out_shape=jax.ShapeDtypeStruct((n, sq, e), xq.dtype),
        grid=(n,),
        in_specs=in_specs,
        out_specs=q_spec,
        compiler_params=pltpu.CompilerParams(dimension_semantics=("parallel",)),
    )(*args)


# ----------------------------------------------------------------------------
# Feed-forward (Linear -> ReLU -> Linear) + residual + LayerNorm, row-tiled
# ----------------------------------------------------------------------------
def _ffn_ln_kernel(x_ref, w1_ref, b1_ref, w2_ref, b2_ref, g_ref, bt_ref, o_ref):
    md = MATMUL_DTYPE
    x = x_ref[...].astype(jnp.float32)                                # (TM, E)
    h = jnp.dot(x.astype(md), w1_ref[...].astype(md),
                preferred_element_type=jnp.float32) + b1_ref[...]
    h = jnp.maximum(h, 0.0)
    y = jnp.dot(h.astype(md), w2_ref[...].astype(md),
                preferred_element_type=jnp.float32) + b2_ref[...]
    o_ref[...] = _layernorm(y + x, g_ref[...], bt_ref[...]).astype(o_ref.dtype)
    # TODO(synk): for large F (e.g. E=1024, F=4096 on v7x), tile the hidden dim F with an
    # accumulator scratch instead of loading full (E,F)/(F,E) weight blocks.


def ffn_ln(x, w1, b1, w2, b2, gamma, beta, *, row_tile=256):
    n, s, e = x.shape
    f = w1.shape[1]
    m = n * s
    x2 = x.reshape(m, e)                      # fold (N, S) into the row dimension
    tm = min(row_tile, m)

    out = pl.pallas_call(
        _ffn_ln_kernel,
        out_shape=jax.ShapeDtypeStruct((m, e), x.dtype),
        grid=(pl.cdiv(m, tm),),
        in_specs=[
            pl.BlockSpec((tm, e), lambda i: (i, 0)),
            pl.BlockSpec((e, f), lambda i: (0, 0)),
            pl.BlockSpec((1, f), lambda i: (0, 0)),
            pl.BlockSpec((f, e), lambda i: (0, 0)),
            pl.BlockSpec((1, e), lambda i: (0, 0)),
            pl.BlockSpec((1, e), lambda i: (0, 0)),
            pl.BlockSpec((1, e), lambda i: (0, 0)),
        ],
        out_specs=pl.BlockSpec((tm, e), lambda i: (i, 0)),
        compiler_params=pltpu.CompilerParams(dimension_semantics=("parallel",)),
    )(x2, w1, b1.reshape(1, f), w2, b2.reshape(1, e),
      gamma.reshape(1, e), beta.reshape(1, e))
    return out.reshape(n, s, e)


# ----------------------------------------------------------------------------
# DecoderBlock forward
# ----------------------------------------------------------------------------
def decoder_block_forward(params, x, value, key, trg_mask, src_mask=None):
    heads = params["heads"]

    # Convert 0/1 keep-masks to additive bf16 biases once on the host (0 keep, -1e30 masked).
    def to_bias(m):
        return None if m is None else jnp.where(m == 0, NEG_INF, 0.0).astype(jnp.bfloat16)

    trg_bias = to_bias(trg_mask)
    src_bias = to_bias(src_mask)

    # DecoderBlock: query = dropout(norm(self.attention(x, x, x, trg_mask) + x))
    # TODO(synk): dropout is identity (inference mode); no RNG-based dropout applied.
    query = self_attention_ln(x, params["att1_wqkv"], params["att1_wo3"], params["att1_bo"],
                              params["norm_g"], params["norm_b"], trg_bias, heads=heads)

    # TransformerBlock: x2 = dropout(norm1(attention(value, key, query, src_mask) + query))
    x2 = cross_attention_ln(query, key, value,
                            params["att2_wq"], params["att2_wk"], params["att2_wv"],
                            params["att2_wo3"], params["att2_bo"],
                            params["norm1_g"], params["norm1_b"], src_bias, heads=heads)

    # out = dropout(norm2(feed_fwd(x2) + x2))
    out = ffn_ln(x2, params["ff_w1"], params["ff_b1"], params["ff_w2"], params["ff_b2"],
                 params["norm2_g"], params["norm2_b"])
    return out


def init_params(key, embed_size, heads, forward_expansion):
    e = embed_size
    hd = e // heads
    f = forward_expansion * e
    ks = jax.random.split(key, 10)
    scale = 0.02

    def w(k, shape):
        return (scale * jax.random.normal(k, shape)).astype(jnp.float32)

    # nn.Linear weights stored pre-transposed as (in, out): y = x @ W + b.
    a1_wq, a1_wk, a1_wv, a1_wo = (w(ks[i], (e, e)) for i in range(4))
    a2_wq, a2_wk, a2_wv, a2_wo = (w(ks[i], (e, e)) for i in range(4, 8))

    return {
        "heads": heads,
        # DecoderBlock.attention — fused QKV weight (E, 3E), column blocks = [Q | K | V];
        # fc_out weight repacked per-head as (H, hd, E) so concat(o_h) @ Wo == sum_h o_h @ Wo3[h].
        "att1_wqkv": jnp.concatenate([a1_wq, a1_wk, a1_wv], axis=1),
        "att1_wo3": a1_wo.reshape(heads, hd, e),
        "att1_bo": jnp.zeros((e,), jnp.float32),
        # DecoderBlock.norm
        "norm_g": jnp.ones((e,), jnp.float32), "norm_b": jnp.zeros((e,), jnp.float32),
        # TransformerBlock.attention (cross-attention: Q/K/V from different tensors)
        "att2_wq": a2_wq, "att2_wk": a2_wk, "att2_wv": a2_wv,
        "att2_wo3": a2_wo.reshape(heads, hd, e),
        "att2_bo": jnp.zeros((e,), jnp.float32),
        # TransformerBlock norms
        "norm1_g": jnp.ones((e,), jnp.float32), "norm1_b": jnp.zeros((e,), jnp.float32),
        "norm2_g": jnp.ones((e,), jnp.float32), "norm2_b": jnp.zeros((e,), jnp.float32),
        # TransformerBlock feed-forward
        "ff_w1": w(ks[8], (e, f)), "ff_b1": jnp.zeros((f,), jnp.float32),
        "ff_w2": w(ks[9], (f, e)), "ff_b2": jnp.zeros((e,), jnp.float32),
    }


if __name__ == "__main__":
    N, S, E = 2, 8, 32          # batch, seq, embed
    HEADS = 4
    FWD_EXP = 4

    root = jax.random.PRNGKey(0)
    kp, kx, kv, kk = jax.random.split(root, 4)

    params = init_params(kp, E, HEADS, FWD_EXP)

    x = jax.random.normal(kx, (N, S, E), dtype=jnp.float32)
    value = jax.random.normal(kv, (N, S, E), dtype=jnp.float32)
    key = jax.random.normal(kk, (N, S, E), dtype=jnp.float32)

    # Causal target mask (lower-triangular), 1 = keep, 0 = masked.
    trg_mask = jnp.broadcast_to(
        jnp.tril(jnp.ones((S, S), dtype=jnp.int32)), (N, S, S)
    )
    src_mask = None

    out = decoder_block_forward(params, x, value, key, trg_mask, src_mask)
    out = jax.block_until_ready(out)
    assert out.shape == (N, S, E) and out.dtype == jnp.float32
    print("KERNEL_OK")
</pallas_src>

<mosaic_0001>
module attributes {stable_mosaic.version = 11 : i64} {
  func.func @_self_attn_ln_kernel(%arg0: i32, %arg1: memref<1x8x32xf32, #tpu.memory_space<vmem>>, %arg2: memref<1x8x8xbf16, #tpu.memory_space<vmem>>, %arg3: memref<32x96xf32, #tpu.memory_space<vmem>>, %arg4: memref<4x8x32xf32, #tpu.memory_space<vmem>>, %arg5: memref<1x32xf32, #tpu.memory_space<vmem>>, %arg6: memref<1x32xf32, #tpu.memory_space<vmem>>, %arg7: memref<1x32xf32, #tpu.memory_space<vmem>>, %arg8: memref<1x8x32xf32, #tpu.memory_space<vmem>>) attributes {dimension_semantics = [#tpu.dimension_semantics<parallel>], iteration_bounds = array<i64: 2>, scalar_prefetch = 0 : i64, scratch_operands = 0 : i64, tpu.core_type = #tpu.core_type<tc>, window_params = [{transform_indices = @transform_0, window_bounds = array<i64: 1, 8, 32>}, {transform_indices = @transform_1, window_bounds = array<i64: 1, 8, 8>}, {pipeline_mode = #tpu.pipeline_mode<synchronous>, transform_indices = @transform_2, window_bounds = array<i64: 32, 96>}, {pipeline_mode = #tpu.pipeline_mode<synchronous>, transform_indices = @transform_3, window_bounds = array<i64: 4, 8, 32>}, {pipeline_mode = #tpu.pipeline_mode<synchronous>, transform_indices = @transform_4, window_bounds = array<i64: 1, 32>}, {pipeline_mode = #tpu.pipeline_mode<synchronous>, transform_indices = @transform_5, window_bounds = array<i64: 1, 32>}, {pipeline_mode = #tpu.pipeline_mode<synchronous>, transform_indices = @transform_6, window_bounds = array<i64: 1, 32>}, {transform_indices = @transform_7, window_bounds = array<i64: 1, 8, 32>}]} {
    %c0 = arith.constant 0 : index
    %c0_0 = arith.constant 0 : index
    %c0_1 = arith.constant 0 : index
    %0 = vector.load %arg1[%c0, %c0_0, %c0_1] : memref<1x8x32xf32, #tpu.memory_space<vmem>>, vector<1x8x32xf32>
    %1 = vector.shape_cast %0 : vector<1x8x32xf32> to vector<8x32xf32>
    %2 = arith.truncf %1 : vector<8x32xf32> to vector<8x32xbf16>
    %c0_2 = arith.constant 0 : index
    %c0_3 = arith.constant 0 : index
    %3 = vector.load %arg3[%c0_2, %c0_3] : memref<32x96xf32, #tpu.memory_space<vmem>>, vector<32x96xf32>
    %4 = arith.truncf %3 : vector<32x96xf32> to vector<32x96xbf16>
    %cst = arith.constant dense<0.000000e+00> : vector<8x96xf32>
    %5 = tpu.matmul %2, %4, %cst {dimension_numbers = #tpu.dot_dimension_numbers<[1], [0], [0], [1], [0, 0, 1, 1], [], []>} : vector<8x32xbf16>, vector<32x96xbf16>, vector<8x96xf32> -> vector<8x96xf32>
    %6 = vector.extract_strided_slice %5 {offsets = [0, 0], sizes = [8, 32], strides = [1, 1]} : vector<8x96xf32> to vector<8x32xf32>
    %7 = vector.extract_strided_slice %5 {offsets = [0, 32], sizes = [8, 32], strides = [1, 1]} : vector<8x96xf32> to vector<8x32xf32>
    %8 = vector.extract_strided_slice %5 {offsets = [0, 64], sizes = [8, 32], strides = [1, 1]} : vector<8x96xf32> to vector<8x32xf32>
    %c0_4 = arith.constant 0 : index
    %c0_5 = arith.constant 0 : index
    %c0_6 = arith.constant 0 : index
    %9 = vector.load %arg2[%c0_4, %c0_5, %c0_6] : memref<1x8x8xbf16, #tpu.memory_space<vmem>>, vector<1x8x8xbf16>
    %10 = vector.shape_cast %9 : vector<1x8x8xbf16> to vector<8x8xbf16>
    %11 = arith.extf %10 : vector<8x8xbf16> to vector<8x8xf32>
    %c0_7 = arith.constant 0 : index
    %c0_8 = arith.constant 0 : index
    %c0_9 = arith.constant 0 : index
    %12 = vector.load %arg4[%c0_7, %c0_8, %c0_9] : memref<4x8x32xf32, #tpu.memory_space<vmem>>, vector<4x8x32xf32>
    %c0_10 = arith.constant 0 : index
    %c0_11 = arith.constant 0 : index
    %13 = vector.load %arg5[%c0_10, %c0_11] : memref<1x32xf32, #tpu.memory_space<vmem>>, vector<1x32xf32>
    %c0_12 = arith.constant 0 : index
    %c0_13 = arith.constant 0 : index
    %14 = vector.load %arg6[%c0_12, %c0_13] : memref<1x32xf32, #tpu.memory_space<vmem>>, vector<1x32xf32>
    %c0_14 = arith.constant 0 : index
    %c0_15 = arith.constant 0 : index
    %15 = vector.load %arg7[%c0_14, %c0_15] : memref<1x32xf32, #tpu.memory_space<vmem>>, vector<1x32xf32>
    %cst_16 = arith.constant 0.353553385 : f32
    %16 = vector.broadcast %cst_16 : f32 to vector<8x32xf32>
    %17 = arith.mulf %6, %16 : vector<8x32xf32>
    %18 = arith.truncf %17 : vector<8x32xf32> to vector<8x32xbf16>
    %19 = arith.truncf %7 : vector<8x32xf32> to vector<8x32xbf16>
    %20 = arith.truncf %8 : vector<8x32xf32> to vector<8x32xbf16>
    %21 = vector.extract_strided_slice %18 {offsets = [0, 0], sizes = [8, 8], strides = [1, 1]} : vector<8x32xbf16> to vector<8x8xbf16>
    %22 = vector.extract_strided_slice %18 {offsets = [0, 8], sizes = [8, 8], strides = [1, 1]} : vector<8x32xbf16> to vector<8x8xbf16>
    %23 = vector.extract_strided_slice %18 {offsets = [0, 16], sizes = [8, 8], strides = [1, 1]} : vector<8x32xbf16> to vector<8x8xbf16>
    %24 = vector.extract_strided_slice %18 {offsets = [0, 24], sizes = [8, 8], strides = [1, 1]} : vector<8x32xbf16> to vector<8x8xbf16>
    %25 = vector.shape_cast %21 : vector<8x8xbf16> to vector<1x8x8xbf16>
    %26 = vector.shape_cast %22 : vector<8x8xbf16> to vector<1x8x8xbf16>
    %27 = vector.shape_cast %23 : vector<8x8xbf16> to vector<1x8x8xbf16>
    %28 = vector.shape_cast %24 : vector<8x8xbf16> to vector<1x8x8xbf16>
    %29 = tpu.concatenate %25, %26, %27, %28 in 0 : vector<1x8x8xbf16>, vector<1x8x8xbf16>, vector<1x8x8xbf16>, vector<1x8x8xbf16> -> vector<4x8x8xbf16>
    %30 = vector.extract_strided_slice %19 {offsets = [0, 0], sizes = [8, 8], strides = [1, 1]} : vector<8x32xbf16> to vector<8x8xbf16>
    %31 = vector.extract_strided_slice %19 {offsets = [0, 8], sizes = [8, 8], strides = [1, 1]} : vector<8x32xbf16> to vector<8x8xbf16>
    %32 = vector.extract_strided_slice %19 {offsets = [0, 16], sizes = [8, 8], strides = [1, 1]} : vector<8x32xbf16> to vector<8x8xbf16>
    %33 = vector.extract_strided_slice %19 {offsets = [0, 24], sizes = [8, 8], strides = [1, 1]} : vector<8x32xbf16> to vector<8x8xbf16>
    %34 = vector.shape_cast %30 : vector<8x8xbf16> to vector<1x8x8xbf16>
    %35 = vector.shape_cast %31 : vector<8x8xbf16> to vector<1x8x8xbf16>
    %36 = vector.shape_cast %32 : vector<8x8xbf16> to vector<1x8x8xbf16>
    %37 = vector.shape_cast %33 : vector<8x8xbf16> to vector<1x8x8xbf16>
    %38 = tpu.concatenate %34, %35, %36, %37 in 0 : vector<1x8x8xbf16>, vector<1x8x8xbf16>, vector<1x8x8xbf16>, vector<1x8x8xbf16> -> vector<4x8x8xbf16>
    %39 = vector.extract_strided_slice %20 {offsets = [0, 0], sizes = [8, 8], strides = [1, 1]} : vector<8x32xbf16> to vector<8x8xbf16>
    %40 = vector.extract_strided_slice %20 {offsets = [0, 8], sizes = [8, 8], strides = [1, 1]} : vector<8x32xbf16> to vector<8x8xbf16>
    %41 = vector.extract_strided_slice %20 {offsets = [0, 16], sizes = [8, 8], strides = [1, 1]} : vector<8x32xbf16> to vector<8x8xbf16>
    %42 = vector.extract_strided_slice %20 {offsets = [0, 24], sizes = [8, 8], strides = [1, 1]} : vector<8x32xbf16> to vector<8x8xbf16>
    %43 = vector.shape_cast %39 : vector<8x8xbf16> to vector<1x8x8xbf16>
    %44 = vector.shape_cast %40 : vector<8x8xbf16> to vector<1x8x8xbf16>
    %45 = vector.shape_cast %41 : vector<8x8xbf16> to vector<1x8x8xbf16>
    %46 = vector.shape_cast %42 : vector<8x8xbf16> to vector<1x8x8xbf16>
    %47 = tpu.concatenate %43, %44, %45, %46 in 0 : vector<1x8x8xbf16>, vector<1x8x8xbf16>, vector<1x8x8xbf16>, vector<1x8x8xbf16> -> vector<4x8x8xbf16>
    "tpu.trace_start"() <{level = 10 : i32, message = "hqd,hkd->hqk"}> : () -> ()
    %cst_17 = arith.constant dense<0.000000e+00> : vector<4x8x8xf32>
    %48 = tpu.matmul %29, %38, %cst_17 {dimension_numbers = #tpu.dot_dimension_numbers<[2], [2], [1], [1], [0, 0, 0, 1, 1, 1], [0], [0]>} : vector<4x8x8xbf16>, vector<4x8x8xbf16>, vector<4x8x8xf32> -> vector<4x8x8xf32>
    "tpu.trace_stop"() : () -> ()
    %49 = vector.shape_cast %11 : vector<8x8xf32> to vector<1x8x8xf32>
    %50 = vector.broadcast %49 : vector<1x8x8xf32> to vector<4x8x8xf32>
    %51 = arith.addf %48, %50 : vector<4x8x8xf32>
    %cst_18 = arith.constant dense<0xFF800000> : vector<4x8xf32>
    %52 = vector.multi_reduction <maximumf>, %51, %cst_18 [2] : vector<4x8x8xf32> to vector<4x8xf32>
    %53 = vector.shape_cast %52 : vector<4x8xf32> to vector<4x8x1xf32>
    %54 = vector.broadcast %53 : vector<4x8x1xf32> to vector<4x8x8xf32>
    %55 = arith.subf %51, %54 : vector<4x8x8xf32>
    %56 = math.exp %55 : vector<4x8x8xf32>
    %cst_19 = arith.constant dense<0.000000e+00> : vector<4x8xf32>
    %57 = vector.multi_reduction <add>, %56, %cst_19 [2] : vector<4x8x8xf32> to vector<4x8xf32>
    %58 = vector.shape_cast %57 : vector<4x8xf32> to vector<4x8x1xf32>
    %59 = tpu.reciprocal %58 {approx = true} : vector<4x8x1xf32> -> vector<4x8x1xf32>
    %60 = vector.broadcast %59 : vector<4x8x1xf32> to vector<4x8x8xf32>
    %61 = arith.mulf %56, %60 : vector<4x8x8xf32>
    %62 = arith.truncf %61 : vector<4x8x8xf32> to vector<4x8x8xbf16>
    "tpu.trace_start"() <{level = 10 : i32, message = "hqk,hkd->hqd"}> : () -> ()
    %cst_20 = arith.constant dense<0.000000e+00> : vector<4x8x8xf32>
    %63 = tpu.matmul %62, %47, %cst_20 {dimension_numbers = #tpu.dot_dimension_numbers<[2], [1], [1], [2], [0, 0, 0, 1, 1, 2], [0], [0]>} : vector<4x8x8xbf16>, vector<4x8x8xbf16>, vector<4x8x8xf32> -> vector<4x8x8xf32>
    "tpu.trace_stop"() : () -> ()
    %64 = arith.truncf %63 : vector<4x8x8xf32> to vector<4x8x8xbf16>
    %65 = arith.truncf %12 : vector<4x8x32xf32> to vector<4x8x32xbf16>
    "tpu.trace_start"() <{level = 10 : i32, message = "hqd,hde->hqe"}> : () -> ()
    %cst_21 = arith.constant dense<0.000000e+00> : vector<4x8x32xf32>
    %66 = tpu.matmul %64, %65, %cst_21 {dimension_numbers = #tpu.dot_dimension_numbers<[2], [1], [1], [2], [0, 0, 0, 1, 1, 2], [0], [0]>} : vector<4x8x8xbf16>, vector<4x8x32xbf16>, vector<4x8x32xf32> -> vector<4x8x32xf32>
    "tpu.trace_stop"() : () -> ()
    %cst_22 = arith.constant dense<0.000000e+00> : vector<8x32xf32>
    %67 = vector.multi_reduction <add>, %66, %cst_22 [0] : vector<4x8x32xf32> to vector<8x32xf32>
    %68 = vector.broadcast %13 : vector<1x32xf32> to vector<8x32xf32>
    %69 = arith.addf %67, %68 : vector<8x32xf32>
    %70 = arith.addf %69, %1 : vector<8x32xf32>
    %cst_23 = arith.constant dense<0.000000e+00> : vector<8xf32>
    %71 = vector.multi_reduction <add>, %70, %cst_23 [1] : vector<8x32xf32> to vector<8xf32>
    %72 = vector.shape_cast %71 : vector<8xf32> to vector<8x1xf32>
    %cst_24 = arith.constant 3.200000e+01 : f32
    %73 = vector.broadcast %cst_24 : f32 to vector<8x1xf32>
    %74 = arith.divf %72, %73 : vector<8x1xf32>
    %75 = vector.broadcast %74 : vector<8x1xf32> to vector<8x32xf32>
    %76 = arith.subf %70, %75 : vector<8x32xf32>
    %77 = arith.mulf %76, %76 : vector<8x32xf32>
    %cst_25 = arith.constant dense<0.000000e+00> : vector<8xf32>
    %78 = vector.multi_reduction <add>, %77, %cst_25 [1] : vector<8x32xf32> to vector<8xf32>
    %79 = vector.shape_cast %78 : vector<8xf32> to vector<8x1xf32>
    %cst_26 = arith.constant 3.200000e+01 : f32
    %80 = vector.broadcast %cst_26 : f32 to vector<8x1xf32>
    %81 = arith.divf %79, %80 : vector<8x1xf32>
    %cst_27 = arith.constant 9.99999974E-6 : f32
    %82 = vector.broadcast %cst_27 : f32 to vector<8x1xf32>
    %83 = arith.addf %81, %82 : vector<8x1xf32>
    %84 = math.rsqrt %83 : vector<8x1xf32>
    %85 = vector.broadcast %84 : vector<8x1xf32> to vector<8x32xf32>
    %86 = arith.mulf %76, %85 : vector<8x32xf32>
    %87 = vector.broadcast %14 : vector<1x32xf32> to vector<8x32xf32>
    %88 = arith.mulf %86, %87 : vector<8x32xf32>
    %89 = vector.broadcast %15 : vector<1x32xf32> to vector<8x32xf32>
    %90 = arith.addf %88, %89 : vector<8x32xf32>
    %c0_28 = arith.constant 0 : index
    %c0_29 = arith.constant 0 : index
    %c0_30 = arith.constant 0 : index
    %91 = vector.load %arg8[%c0_28, %c0_29, %c0_30] : memref<1x8x32xf32, #tpu.memory_space<vmem>>, vector<1x8x32xf32>
    %92 = vector.shape_cast %91 : vector<1x8x32xf32> to vector<8x32xf32>
    %93 = vector.shape_cast %90 : vector<8x32xf32> to vector<1x8x32xf32>
    tpu.vector_store %arg8[%c0_28, %c0_29, %c0_30], %93 {strides = array<i32>} : memref<1x8x32xf32, #tpu.memory_space<vmem>>, vector<1x8x32xf32>,
    return
  }
  func.func @transform_0(%arg0: i32) -> (i32, i32, i32) {
    %c0_i32 = arith.constant 0 : i32
    %c0_i32_0 = arith.constant 0 : i32
    %c0_i32_1 = arith.constant 0 : i32
    return %arg0, %c0_i32, %c0_i32_0 : i32, i32, i32
  }
  func.func @transform_1(%arg0: i32) -> (i32, i32, i32) {
    %c0_i32 = arith.constant 0 : i32
    %c0_i32_0 = arith.constant 0 : i32
    %c0_i32_1 = arith.constant 0 : i32
    return %arg0, %c0_i32, %c0_i32_0 : i32, i32, i32
  }
  func.func @transform_2(%arg0: i32) -> (i32, i32) {
    %c0_i32 = arith.constant 0 : i32
    %c0_i32_0 = arith.constant 0 : i32
    %c0_i32_1 = arith.constant 0 : i32
    return %c0_i32, %c0_i32_0 : i32, i32
  }
  func.func @transform_3(%arg0: i32) -> (i32, i32, i32) {
    %c0_i32 = arith.constant 0 : i32
    %c0_i32_0 = arith.constant 0 : i32
    %c0_i32_1 = arith.constant 0 : i32
    %c0_i32_2 = arith.constant 0 : i32
    return %c0_i32, %c0_i32_0, %c0_i32_1 : i32, i32, i32
  }
  func.func @transform_4(%arg0: i32) -> (i32, i32) {
    %c0_i32 = arith.constant 0 : i32
    %c0_i32_0 = arith.constant 0 : i32
    %c0_i32_1 = arith.constant 0 : i32
    return %c0_i32, %c0_i32_0 : i32, i32
  }
  func.func @transform_5(%arg0: i32) -> (i32, i32) {
    %c0_i32 = arith.constant 0 : i32
    %c0_i32_0 = arith.constant 0 : i32
    %c0_i32_1 = arith.constant 0 : i32
    return %c0_i32, %c0_i32_0 : i32, i32
  }
  func.func @transform_6(%arg0: i32) -> (i32, i32) {
    %c0_i32 = arith.constant 0 : i32
    %c0_i32_0 = arith.constant 0 : i32
    %c0_i32_1 = arith.constant 0 : i32
    return %c0_i32, %c0_i32_0 : i32, i32
  }
  func.func @transform_7(%arg0: i32) -> (i32, i32, i32) {
    %c0_i32 = arith.constant 0 : i32
    %c0_i32_0 = arith.constant 0 : i32
    %c0_i32_1 = arith.constant 0 : i32
    return %arg0, %c0_i32, %c0_i32_0 : i32, i32, i32
  }
}

</mosaic_0001>

<llo_original>
// kernel: tpu_custom_call.1
$region0: #{tpu_custom_call.1}
  #allocation0 [shape = 'u32[]', space=smem, size = 0x4, offset = 0x4, fixed_abs, tag = 'smem constant byte address 0x4 - core index']
  #allocation1 [shape = 'u32[144,128]{1,0:T(1,128)}', space=vmem, size = 0x12000, scoped, tag = 'internal scratch']
  %s0 = inlined_call_operand.hbm [shape: f32[2,8,32], index: 0, kind: input, shape index: {}]
  %s1 = inlined_call_operand.hbm [shape: bf16[2,8,8], index: 1, kind: input, shape index: {}]
  %s2 = inlined_call_operand.hbm [shape: f32[32,96], index: 2, kind: input, shape index: {}]
  %s3 = inlined_call_operand.hbm [shape: f32[4,8,32], index: 3, kind: input, shape index: {}]
  %s4 = inlined_call_operand.vmem [shape: f32[1,32], index: 4, kind: input, shape index: {}]
  %s5 = inlined_call_operand.vmem [shape: f32[1,32], index: 5, kind: input, shape index: {}]
  %s6 = inlined_call_operand.vmem [shape: f32[1,32], index: 6, kind: input, shape index: {}]
  %s7 = inlined_call_operand.hbm [shape: f32[2,8,32], index: 7, kind: output, shape index: {}]
  %s8 = sld [smem:[#allocation0]]
  $region77: #{tpu_custom_call.1} parent=0
    _
  %s10 = ssub.s32 1, %s8
  %s11 = scalar_select 0, %s10, %s8
  $region1: #{tpu_custom_call.1} parent=0
    #allocation2 [shape = 'u8[8192]{0}', space=vmem, size = 0x2000, scoped, tag = 'input window, operand 0']
    #allocation3 [shape = 's32[2]{0}', space=sflag, size = 0x8, scoped, tag = 'scoped memory for tpu_custom_call.1']
    #allocation4 [shape = 's32[2]{0}', space=sflag, size = 0x8, scoped, tag = 'scoped memory for tpu_custom_call.1']
    #allocation5 [shape = 'u8[4096]{0}', space=vmem, size = 0x1000, scoped, tag = 'input window, operand 1']
    #allocation6 [shape = 's32[2]{0}', space=sflag, size = 0x8, scoped, tag = 'scoped memory for tpu_custom_call.1']
    #allocation7 [shape = 'u8[16384]{0}', space=vmem, size = 0x4000, scoped, tag = 'input window, operand 2, single buffered']
    #allocation8 [shape = 'u8[16384]{0}', space=vmem, size = 0x4000, scoped, tag = 'input window, operand 3, single buffered']
    #allocation9 [shape = 's32[1]{0}', space=sflag, size = 0x4, scoped, tag = 'scoped memory for tpu_custom_call.1']
    #allocation10 [shape = 'u8[8192]{0}', space=vmem, size = 0x2000, scoped, tag = 'output window, operand 0']
    %12 = vsyncpa [#allocation3], 0
    %s13 = scalar_lea.sflag [#allocation3], 1
    %14 = vsyncpa %s13, 0
    %15 = vsyncpa [#allocation6], 0
    %s16 = scalar_lea.sflag [#allocation6], 1
    %17 = vsyncpa %s16, 0
    %18 = vsyncpa [#allocation9], 0
    %19 = vsyncpa [#allocation4], 0
    %s20 = scalar_lea.sflag [#allocation4], 1
    %21 = vsyncpa %s20, 0
    loop: start=0, step=1, limit=4
    $region2: #{tpu_custom_call.1} parent=1 // loop_pre_header
      _
    $region3: #{tpu_custom_call.1} parent=1 // loop_header
      %s23 = sphi 0, %s27
      %p24 = scmp.ge.s32.totalorder %s23, 4
      %s33 = sphi 0, %s35
      %s36 = sphi 0, %s33
      %s37 = sphi 0, %s36
      %s53 = sphi 0, %s37
      %s59 = sphi 0, %s61
      %s62 = sphi 0, %s59
      %s63 = sphi 0, %s62
      %s79 = sphi 0, %s63
      %s83 = sphi 0, %s83
      %s85 = sphi 0, %s83
      %s86 = sphi 0, %s85
      %s100 = sphi 0, %s86
      %s104 = sphi 0, %s104
      %s106 = sphi 0, %s104
      %s107 = sphi 0, %s106
      %s121 = sphi 0, %s107
      %s125 = sphi 0, %s125
      %s127 = sphi 0, %s125
      %s128 = sphi 0, %s127
      %s142 = sphi 0, %s128
      %s146 = sphi 0, %s146
      %s148 = sphi 0, %s146
      %s149 = sphi 0, %s148
      %s163 = sphi 0, %s149
      %s167 = sphi 0, %s167
      %s169 = sphi 0, %s167
      %s170 = sphi 0, %s169
      %s184 = sphi 0, %s170
      %s190 = sphi 0, %s192
      %s193 = sphi 0, %s190
      %s194 = sphi 0, %s193
      %s210 = sphi 0, %s194
    $region4: #{tpu_custom_call.1} parent=1 // loop_header_branch
      %26 = sbr.rel (%p24) target = $region8
    $region5: #{tpu_custom_call.1} parent=1 // loop_body
      %s28 = ssub.s32 %s23, 1
      %s29 = ssub.s32 %s23, 2
      %s30 = sadd.s32 %s23, 1
      %s31 = ssub.s32 %s23, %s30
      %p32 = scmp.eq.s32.totalorder %s31, 0
      %s34 = sadd.s32 %s33, 1
      %s35 = scalar_select %p32, %s33, %s34
      %p38 = pneg %p32
      %p39 = scmp.eq.s32.totalorder %s23, 1
      %p40 = por %p38, %p39
      %p41 = scmp.ne.s32.totalorder %s33, %s36
      %p42 = scmp.eq.s32.totalorder %s23, 0
      %p43 = por %p41, %p42
      %p44 = scmp.ne.s32.totalorder %s33, %s36
      %p45 = scmp.eq.s32.totalorder %s28, 1
      %p46 = por %p44, %p45
      %p47 = scmp.ne.s32.totalorder %s36, %s37
      %p48 = scmp.eq.s32.totalorder %s28, 0
      %p49 = por %p47, %p48
      %p50 = scmp.ne.s32.totalorder %s36, %s37
      %p51 = scmp.eq.s32.totalorder %s29, 1
      %p52 = por %p50, %p51
      %p54 = scmp.ne.s32.totalorder %s37, %s53
      %p55 = scmp.eq.s32.totalorder %s29, 0
      %p56 = por %p54, %p55
      %s57 = ssub.s32 %s23, %s30
      %p58 = scmp.eq.s32.totalorder %s57, 0
      %s60 = sadd.s32 %s59, 1
      %s61 = scalar_select %p58, %s59, %s60
      %p64 = pneg %p58
      %p65 = scmp.eq.s32.totalorder %s23, 1
      %p66 = por %p64, %p65
      %p67 = scmp.ne.s32.totalorder %s59, %s62
      %p68 = scmp.eq.s32.totalorder %s23, 0
      %p69 = por %p67, %p68
      %p70 = scmp.ne.s32.totalorder %s59, %s62
      %p71 = scmp.eq.s32.totalorder %s28, 1
      %p72 = por %p70, %p71
      %p73 = scmp.ne.s32.totalorder %s62, %s63
      %p74 = scmp.eq.s32.totalorder %s28, 0
      %p75 = por %p73, %p74
      %p76 = scmp.ne.s32.totalorder %s62, %s63
      %p77 = scmp.eq.s32.totalorder %s29, 1
      %p78 = por %p76, %p77
      %p80 = scmp.ne.s32.totalorder %s63, %s79
      %p81 = scmp.eq.s32.totalorder %s29, 0
      %p82 = por %p80, %p81
      %s84 = sadd.s32 %s83, 1
      %p87 = scmp.eq.s32.totalorder %s23, 1
      %p88 = scmp.ne.s32.totalorder %s83, %s85
      %p89 = scmp.eq.s32.totalorder %s23, 0
      %p90 = por %p88, %p89
      %p91 = scmp.ne.s32.totalorder %s83, %s85
      %p92 = scmp.eq.s32.totalorder %s28, 1
      %p93 = por %p91, %p92
      %p94 = scmp.ne.s32.totalorder %s85, %s86
      %p95 = scmp.eq.s32.totalorder %s28, 0
      %p96 = por %p94, %p95
      %p97 = scmp.ne.s32.totalorder %s85, %s86
      %p98 = scmp.eq.s32.totalorder %s29, 1
      %p99 = por %p97, %p98
      %p101 = scmp.ne.s32.totalorder %s86, %s100
      %p102 = scmp.eq.s32.totalorder %s29, 0
      %p103 = por %p101, %p102
      %s105 = sadd.s32 %s104, 1
      %p108 = scmp.eq.s32.totalorder %s23, 1
      %p109 = scmp.ne.s32.totalorder %s104, %s106
      %p110 = scmp.eq.s32.totalorder %s23, 0
      %p111 = por %p109, %p110
      %p112 = scmp.ne.s32.totalorder %s104, %s106
      %p113 = scmp.eq.s32.totalorder %s28, 1
      %p114 = por %p112, %p113
      %p115 = scmp.ne.s32.totalorder %s106, %s107
      %p116 = scmp.eq.s32.totalorder %s28, 0
      %p117 = por %p115, %p116
      %p118 = scmp.ne.s32.totalorder %s106, %s107
      %p119 = scmp.eq.s32.totalorder %s29, 1
      %p120 = por %p118, %p119
      %p122 = scmp.ne.s32.totalorder %s107, %s121
      %p123 = scmp.eq.s32.totalorder %s29, 0
      %p124 = por %p122, %p123
      %s126 = sadd.s32 %s125, 1
      %p129 = scmp.eq.s32.totalorder %s23, 1
      %p130 = scmp.ne.s32.totalorder %s125, %s127
      %p131 = scmp.eq.s32.totalorder %s23, 0
      %p132 = por %p130, %p131
      %p133 = scmp.ne.s32.totalorder %s125, %s127
      %p134 = scmp.eq.s32.totalorder %s28, 1
      %p135 = por %p133, %p134
      %p136 = scmp.ne.s32.totalorder %s127, %s128
      %p137 = scmp.eq.s32.totalorder %s28, 0
      %p138 = por %p136, %p137
      %p139 = scmp.ne.s32.totalorder %s127, %s128
      %p140 = scmp.eq.s32.totalorder %s29, 1
      %p141 = por %p139, %p140
      %p143 = scmp.ne.s32.totalorder %s128, %s142
      %p144 = scmp.eq.s32.totalorder %s29, 0
      %p145 = por %p143, %p144
      %s147 = sadd.s32 %s146, 1
      %p150 = scmp.eq.s32.totalorder %s23, 1
      %p151 = scmp.ne.s32.totalorder %s146, %s148
      %p152 = scmp.eq.s32.totalorder %s23, 0
      %p153 = por %p151, %p152
      %p154 = scmp.ne.s32.totalorder %s146, %s148
      %p155 = scmp.eq.s32.totalorder %s28, 1
      %p156 = por %p154, %p155
      %p157 = scmp.ne.s32.totalorder %s148, %s149
      %p158 = scmp.eq.s32.totalorder %s28, 0
      %p159 = por %p157, %p158
      %p160 = scmp.ne.s32.totalorder %s148, %s149
      %p161 = scmp.eq.s32.totalorder %s29, 1
      %p162 = por %p160, %p161
      %p164 = scmp.ne.s32.totalorder %s149, %s163
      %p165 = scmp.eq.s32.totalorder %s29, 0
      %p166 = por %p164, %p165
      %s168 = sadd.s32 %s167, 1
      %p171 = scmp.eq.s32.totalorder %s23, 1
      %p172 = scmp.ne.s32.totalorder %s167, %s169
      %p173 = scmp.eq.s32.totalorder %s23, 0
      %p174 = por %p172, %p173
      %p175 = scmp.ne.s32.totalorder %s167, %s169
      %p176 = scmp.eq.s32.totalorder %s28, 1
      %p177 = por %p175, %p176
      %p178 = scmp.ne.s32.totalorder %s169, %s170
      %p179 = scmp.eq.s32.totalorder %s28, 0
      %p180 = por %p178, %p179
      %p181 = scmp.ne.s32.totalorder %s169, %s170
      %p182 = scmp.eq.s32.totalorder %s29, 1
      %p183 = por %p181, %p182
      %p185 = scmp.ne.s32.totalorder %s170, %s184
      %p186 = scmp.eq.s32.totalorder %s29, 0
      %p187 = por %p185, %p186
      %s188 = ssub.s32 %s23, %s30
      %p189 = scmp.eq.s32.totalorder %s188, 0
      %s191 = sadd.s32 %s190, 1
      %s192 = scalar_select %p189, %s190, %s191
      %p195 = pneg %p189
      %p196 = scmp.eq.s32.totalorder %s23, 1
      %p197 = por %p195, %p196
      %p198 = scmp.ne.s32.totalorder %s190, %s193
      %p199 = scmp.eq.s32.totalorder %s23, 0
      %p200 = por %p198, %p199
      %p201 = scmp.ne.s32.totalorder %s190, %s193
      %p202 = scmp.eq.s32.totalorder %s28, 1
      %p203 = por %p201, %p202
      %p204 = scmp.ne.s32.totalorder %s193, %s194
      %p205 = scmp.eq.s32.totalorder %s28, 0
      %p206 = por %p204, %p205
      %p207 = scmp.ne.s32.totalorder %s193, %s194
      %p208 = scmp.eq.s32.totalorder %s29, 1
      %p209 = por %p207, %p208
      %p211 = scmp.ne.s32.totalorder %s194, %s210
      %p212 = scmp.eq.s32.totalorder %s29, 0
      %p213 = por %p211, %p212
      %p214 = scmp.le.s32.totalorder 1, %s23
      %p215 = scmp.lt.s32.totalorder %s23, 3
      %p216 = pnand %p214, %p215
      %p217 = pneg %p216
      // Predicated region
      $region9: #{tpu_custom_call.1} parent=5 // pred_check
        _
      $region10: #{tpu_custom_call.1} parent=5 // pred_check_branch
        %219 = sbr.rel (%p216) target = $region12
      $region11: #{tpu_custom_call.1} parent=5 // pred_region
        %s220 = ssub.s32 %s23, 1
        // Predicated region
        $region13: #{tpu_custom_call.1} parent=11 // pred_check
          %p221 = pneg %p96
        $region14: #{tpu_custom_call.1} parent=11 // pred_check_branch
          %223 = sbr.rel (%p221) target = $region16
        $region15: #{tpu_custom_call.1} parent=11 // pred_region
          %s225 = ssub.s32 512, 512
          %226 = vsyncadd [#allocation6], %s225
          %s227 = sshll.u32 [#allocation7], 4
          %s228 = int_to_ptr.vmem [resolvable:$true] %s227
          %233 = dma.hbm_to_vmem [thread:$0]  %s2, 512, %s228, [#allocation6], 128, 128, 8
        $region16: #{tpu_custom_call.1} parent=11 // pred_fallthru
          _
        // Predicated region
        $region17: #{tpu_custom_call.1} parent=11 // pred_check
          %p234 = pneg %p117
        $region18: #{tpu_custom_call.1} parent=11 // pred_check_branch
          %236 = sbr.rel (%p234) target = $region20
        $region19: #{tpu_custom_call.1} parent=11 // pred_region
          %s238 = ssub.s32 512, 512
          %239 = vsyncadd [#allocation9], %s238
          %s240 = sshll.u32 [#allocation8], 4
          %s241 = int_to_ptr.vmem [resolvable:$true] %s240
          %246 = dma.hbm_to_vmem [thread:$0]  %s3, 512, %s241, [#allocation9], 128, 128, 8
        $region20: #{tpu_custom_call.1} parent=11 // pred_fallthru
          _
        // Predicated region
        $region21: #{tpu_custom_call.1} parent=11 // pred_check
          %p247 = pneg %p138
        $region22: #{tpu_custom_call.1} parent=11 // pred_check_branch
          %249 = sbr.rel (%p247) target = $region24
        $region23: #{tpu_custom_call.1} parent=11 // pred_region
          _
        $region24: #{tpu_custom_call.1} parent=11 // pred_fallthru
          _
        // Predicated region
        $region25: #{tpu_custom_call.1} parent=11 // pred_check
          %p250 = pneg %p159
        $region26: #{tpu_custom_call.1} parent=11 // pred_check_branch
          %252 = sbr.rel (%p250) target = $region28
        $region27: #{tpu_custom_call.1} parent=11 // pred_region
          _
        $region28: #{tpu_custom_call.1} parent=11 // pred_fallthru
          _
        // Predicated region
        $region29: #{tpu_custom_call.1} parent=11 // pred_check
          %p253 = pneg %p180
        $region30: #{tpu_custom_call.1} parent=11 // pred_check_branch
          %255 = sbr.rel (%p253) target = $region32
        $region31: #{tpu_custom_call.1} parent=11 // pred_region
          _
        $region32: #{tpu_custom_call.1} parent=11 // pred_fallthru
          _
      $region12: #{tpu_custom_call.1} parent=5 // pred_fallthru
        _
      %p256 = scmp.lt.s32.totalorder %s23, 2
      // Predicated region
      $region33: #{tpu_custom_call.1} parent=5 // pred_check
        %p257 = pneg %p256
      $region34: #{tpu_custom_call.1} parent=5 // pred_check_branch
        %259 = sbr.rel (%p257) target = $region36
      $region35: #{tpu_custom_call.1} parent=5 // pred_region
        // Predicated region
        $region37: #{tpu_custom_call.1} parent=35 // pred_check
          %p260 = pneg %p43
        $region38: #{tpu_custom_call.1} parent=35 // pred_check_branch
          %262 = sbr.rel (%p260) target = $region40
        $region39: #{tpu_custom_call.1} parent=35 // pred_region
          %s263 = sand.u32 %s33, 1
          %s264 = scalar_lea.sflag [#allocation3], %s263
          %s265 = sand.u32 %s33, 1
          %s266 = smul.addr %s265, 8
          %s267 = scalar_lea.vmem [#allocation2], %s266
          %s269 = ssub.s32 128, 128
          %270 = vsyncadd %s264, %s269
          %s271 = smul.addr %s23, 128
          %s272 = scalar_lea.hbm %s0, %s271
          %s274 = sshll.u32 %s267, 4
          %s275 = int_to_ptr.vmem [resolvable:$true] %s274
          %277 = dma.hbm_to_vmem [thread:$0]  %s272, 128, %s275, %s264
        $region40: #{tpu_custom_call.1} parent=35 // pred_fallthru
          _
        // Predicated region
        $region41: #{tpu_custom_call.1} parent=35 // pred_check
          %p278 = pneg %p69
        $region42: #{tpu_custom_call.1} parent=35 // pred_check_branch
          %280 = sbr.rel (%p278) target = $region44
        $region43: #{tpu_custom_call.1} parent=35 // pred_region
          %s281 = sand.u32 %s23, 1
          %s282 = scalar_lea.sflag [#allocation6], %s281
          %s283 = sand.u32 %s59, 1
          %s284 = smul.addr %s283, 4
          %s285 = scalar_lea.vmem [#allocation5], %s284
          %s287 = ssub.s32 64, 64
          %288 = vsyncadd %s282, %s287
          %s289 = smul.addr %s23, 64
          %s290 = scalar_lea.hbm %s1, %s289
          %s292 = sshll.u32 %s285, 4
          %s293 = int_to_ptr.vmem [resolvable:$true] %s292
          %295 = dma.hbm_to_vmem [thread:$0]  %s290, 64, %s293, %s282
        $region44: #{tpu_custom_call.1} parent=35 // pred_fallthru
          _
      $region36: #{tpu_custom_call.1} parent=5 // pred_fallthru
        _
      %p296 = scmp.le.s32.totalorder 1, %s23
      %p297 = scmp.lt.s32.totalorder %s23, 3
      %p298 = pnand %p296, %p297
      %p299 = pneg %p298
      // Predicated region
      $region45: #{tpu_custom_call.1} parent=5 // pred_check
        _
      $region46: #{tpu_custom_call.1} parent=5 // pred_check_branch
        %301 = sbr.rel (%p298) target = $region48
      $region47: #{tpu_custom_call.1} parent=5 // pred_region
        %s302 = ssub.s32 %s23, 1
        %s303 = sand.u32 %s36, 1
        %s304 = scalar_lea.sflag [#allocation3], %s303
        %s305 = sand.u32 %s36, 1
        %s306 = smul.addr %s305, 8
        %s307 = scalar_lea.vmem [#allocation2], %s306
        // Predicated region
        $region49: #{tpu_custom_call.1} parent=47 // pred_check
          %p308 = pneg %p49
        $region50: #{tpu_custom_call.1} parent=47 // pred_check_branch
          %310 = sbr.rel (%p308) target = $region52
        $region51: #{tpu_custom_call.1} parent=47 // pred_region
          %311 = dma.done %s304, 128
        $region52: #{tpu_custom_call.1} parent=47 // pred_fallthru
          _
        %s312 = sand.u32 %s28, 1
        %s313 = scalar_lea.sflag [#allocation6], %s312
        %s314 = sand.u32 %s62, 1
        %s315 = smul.addr %s314, 4
        %s316 = scalar_lea.vmem [#allocation5], %s315
        // Predicated region
        $region53: #{tpu_custom_call.1} parent=47 // pred_check
          %p317 = pneg %p75
        $region54: #{tpu_custom_call.1} parent=47 // pred_check_branch
          %319 = sbr.rel (%p317) target = $region56
        $region55: #{tpu_custom_call.1} parent=47 // pred_region
          %320 = dma.done %s313, 64
        $region56: #{tpu_custom_call.1} parent=47 // pred_fallthru
          _
        // Predicated region
        $region57: #{tpu_custom_call.1} parent=47 // pred_check
          %p321 = pneg %p96
        $region58: #{tpu_custom_call.1} parent=47 // pred_check_branch
          %323 = sbr.rel (%p321) target = $region60
        $region59: #{tpu_custom_call.1} parent=47 // pred_region
          %324 = dma.done [#allocation6], 512
        $region60: #{tpu_custom_call.1} parent=47 // pred_fallthru
          _
        // Predicated region
        $region61: #{tpu_custom_call.1} parent=47 // pred_check
          %p325 = pneg %p117
        $region62: #{tpu_custom_call.1} parent=47 // pred_check_branch
          %327 = sbr.rel (%p325) target = $region64
        $region63: #{tpu_custom_call.1} parent=47 // pred_region
          %328 = dma.done [#allocation9], 512
        $region64: #{tpu_custom_call.1} parent=47 // pred_fallthru
          _
        %s329 = sand.u32 %s36, 1
        %s330 = scalar_lea.sflag [#allocation3], %s329
        %s331 = sand.u32 %s36, 1
        %s332 = smul.addr %s331, 8
        %s333 = scalar_lea.vmem [#allocation2], %s332
        %p334 = pneg %p49
        %p335 = pneg %p46
        %s336 = sand.u32 %s28, 1
        %s337 = scalar_lea.sflag [#allocation6], %s336
        %s338 = sand.u32 %s62, 1
        %s339 = smul.addr %s338, 4
        %s340 = scalar_lea.vmem [#allocation5], %s339
        %p341 = pneg %p75
        %p342 = pneg %p72
        %p343 = pneg %p96
        %p344 = pneg %p93
        %p345 = pneg %p117
        %p346 = pneg %p114
        %p347 = pneg %p138
        %p348 = pneg %p135
        %p349 = pneg %p159
        %p350 = pneg %p156
        %p351 = pneg %p180
        %p352 = pneg %p177
        %p353 = pneg %p206
        %p354 = pneg %p203
        %s355 = sand.u32 %s193, 1
        %s356 = scalar_lea.sflag [#allocation4], %s355
        %s357 = sand.u32 %s193, 1
        %s358 = smul.addr %s357, 8
        %s359 = scalar_lea.vmem [#allocation10], %s358
        %v361 = vld [vmem:[%s307] sm:$0xff]
        %v362 = vpack.c.bf16 %v361, %v361
        %v363 = vld [vmem:[#allocation7] sm:$0xff]
        %v364 = vld [vmem:[#allocation7 + $0x8] sm:$0xff]
        %v365 = vld [vmem:[#allocation7 + $0x10] sm:$0xff]
        %v366 = vld [vmem:[#allocation7 + $0x18] sm:$0xff]
        %v367 = vpack.c.bf16 %v364, %v363
        %v368 = vpack.c.bf16 %v366, %v365
        %vm369 = vcmask 261120
        %v371 = vsel %vm369, %v362, 0
        %373 = vmatprep.subr.bf16.mxu0 0
        %374 = vmatpush1.bf16.msra.mxu0 0
        %375 = vmatprep.subr.bf16.mxu0 0
        %376 = vmatpush1.bf16.msra.mxu0 0
        %377 = vmatprep.subr.bf16.mxu0 0
        %378 = vmatpush1.bf16.msra.mxu0 0
        %379 = vmatprep.subr.bf16.mxu0 0
        %380 = vmatpush1.bf16.msra.mxu0 0
        %381 = vmatprep.subr.bf16.mxu0 0
        %382 = vmatpush1.bf16.msra.mxu0 0
        %383 = vmatprep.subr.bf16.mxu0 0
        %384 = vmatpush1.bf16.msra.mxu0 0
        %385 = vmatprep.subr.bf16.mxu0 0
        %386 = vmatpush1.bf16.msra.mxu0 %v368
        %387 = vmatprep.subr.bf16.mxu0 0
        %388 = vmatpush1.bf16.msra.mxu0 %v367
        %389 = vmatprep.subr.bf16.mxu0 0
        %390 = vmatpush2.bf16.msra.mxu0 0
        %391 = vmatprep.subr.bf16.mxu0 0
        %392 = vmatpush2.bf16.msra.mxu0 0
        %393 = vmatprep.subr.bf16.mxu0 0
        %394 = vmatpush2.bf16.msra.mxu0 0
        %395 = vmatprep.subr.bf16.mxu0 0
        %396 = vmatpush2.bf16.msra.mxu0 0
        %397 = vmatprep.subr.bf16.mxu0 0
        %398 = vmatpush2.bf16.msra.mxu0 0
        %399 = vmatprep.subr.bf16.mxu0 0
        %400 = vmatpush2.bf16.msra.mxu0 0
        %401 = vmatprep.subr.bf16.mxu0 0
        %402 = vmatpush2.bf16.msra.mxu0 0
        %403 = vmatprep.subr.bf16.mxu0 0
        %404 = vmatpush2.bf16.msra.mxu0 0
        %405 = vmatprep.mubr.bf16.mxu0 0
        %406 = vmatmul.mubr.bf16.gmra.mxu0 %v371
        %v407 = vpop.f32.mrf.mxu0
        %v408 = vadd.f32 0.0, %v407
        %v409 = vpop.f32.mrf.mxu0
        %v410 = vpop.f32.mrf.mxu0
        %v411 = vpop.f32.mrf.mxu0
        %412 = vdwg.mxu0
        %v413 = vld [vmem:[%s316] sm:$0xf]
        %v414 = vunpack.c.l.bf16 %v413
        %v415 = vld [vmem:[#allocation8] sm:$0xff]
        %v416 = vld [vmem:[#allocation8 + $0x8] sm:$0xff]
        %v417 = vld [vmem:[#allocation8 + $0x10] sm:$0xff]
        %v418 = vld [vmem:[#allocation8 + $0x18] sm:$0xff]
        %v419 = vld [vmem:[%s4] sm:$0x1]
        %v420 = vld [vmem:[%s5] sm:$0x1]
        %v421 = vld [vmem:[%s6] sm:$0x1]
        %v422 = vmul.f32 %v408, 0.35355338
        %v423 = vpack.c.bf16 %v422, %v422
        %v424 = vpack.c.bf16 %v408, %v408
        %426 = vrot.lane.b32.xlu0 %v423, 120
        %v427 = vpop.permute.xlu0 %426
        %428 = vrot.lane.b32.xlu0 %v423, 112
        %v429 = vpop.permute.xlu0 %428
        %430 = vrot.lane.b32.xlu0 %v423, 104
        %v431 = vpop.permute.xlu0 %430
        %433 = vrot.lane.b32.xlu0 %v424, 120
        %v434 = vpop.permute.xlu0 %433
        %435 = vrot.lane.b32.xlu0 %v424, 112
        %v436 = vpop.permute.xlu0 %435
        %437 = vrot.lane.b32.xlu0 %v424, 104
        %v438 = vpop.permute.xlu0 %437
        %439 = vrot.lane.b32.xlu0 %v424, 96
        %v440 = vpop.permute.xlu0 %439
        %vm441 = vcmask 64512
        %v443 = vsel %vm441, %v423, 0
        %v446 = vsel %vm441, %v440, 0
        %448 = vmatprep.subr.bf16.mxu0 0
        %449 = vmatpush1.bf16.xpose.msra.mxu0 0
        %450 = vmatprep.subr.bf16.mxu0 0
        %451 = vmatpush1.bf16.xpose.msra.mxu0 0
        %452 = vmatprep.subr.bf16.mxu0 0
        %453 = vmatpush1.bf16.xpose.msra.mxu0 0
        %454 = vmatprep.subr.bf16.mxu0 0
        %455 = vmatpush1.bf16.xpose.msra.mxu0 0
        %456 = vmatprep.subr.bf16.mxu0 0
        %457 = vmatpush1.bf16.xpose.msra.mxu0 0
        %458 = vmatprep.subr.bf16.mxu0 0
        %459 = vmatpush1.bf16.xpose.msra.mxu0 0
        %460 = vmatprep.subr.bf16.mxu0 0
        %461 = vmatpush1.bf16.xpose.msra.mxu0 0
        %462 = vmatprep.subr.bf16.mxu0 0
        %463 = vmatpush1.bf16.xpose.msra.mxu0 %v446
        %464 = vmatprep.subr.bf16.mxu0 0
        %465 = vmatpush2.bf16.xpose.msra.mxu0 0
        %466 = vmatprep.subr.bf16.mxu0 0
        %467 = vmatpush2.bf16.xpose.msra.mxu0 0
        %468 = vmatprep.subr.bf16.mxu0 0
        %469 = vmatpush2.bf16.xpose.msra.mxu0 0
        %470 = vmatprep.subr.bf16.mxu0 0
        %471 = vmatpush2.bf16.xpose.msra.mxu0 0
        %472 = vmatprep.subr.bf16.mxu0 0
        %473 = vmatpush2.bf16.xpose.msra.mxu0 0
        %474 = vmatprep.subr.bf16.mxu0 0
        %475 = vmatpush2.bf16.xpose.msra.mxu0 0
        %476 = vmatprep.subr.bf16.mxu0 0
        %477 = vmatpush2.bf16.xpose.msra.mxu0 0
        %478 = vmatprep.subr.bf16.mxu0 0
        %479 = vmatpush2.bf16.xpose.msra.mxu0 0
        %480 = vmatprep.mubr.bf16.mxu0 0
        %481 = vmatmul.mubr.bf16.gmra.mxu0 %v443
        %v482 = vpop.f32.mrf.mxu0
        %v483 = vadd.f32 %v414, %v482
        %v484 = vpop.f32.mrf.mxu0
        %v485 = vpop.f32.mrf.mxu0
        %v486 = vpop.f32.mrf.mxu0
        %487 = vdwg.mxu0
        %488 = vrot.lane.b32.xlu0 %v434, 96
        %v489 = vpop.permute.xlu0 %488
        %v491 = vsel %vm441, %v427, 0
        %v494 = vsel %vm441, %v489, 0
        %496 = vmatprep.subr.bf16.mxu0 0
        %497 = vmatpush1.bf16.xpose.msra.mxu0 0
        %498 = vmatprep.subr.bf16.mxu0 0
        %499 = vmatpush1.bf16.xpose.msra.mxu0 0
        %500 = vmatprep.subr.bf16.mxu0 0
        %501 = vmatpush1.bf16.xpose.msra.mxu0 0
        %502 = vmatprep.subr.bf16.mxu0 0
        %503 = vmatpush1.bf16.xpose.msra.mxu0 0
        %504 = vmatprep.subr.bf16.mxu0 0
        %505 = vmatpush1.bf16.xpose.msra.mxu0 0
        %506 = vmatprep.subr.bf16.mxu0 0
        %507 = vmatpush1.bf16.xpose.msra.mxu0 0
        %508 = vmatprep.subr.bf16.mxu0 0
        %509 = vmatpush1.bf16.xpose.msra.mxu0 0
        %510 = vmatprep.subr.bf16.mxu0 0
        %511 = vmatpush1.bf16.xpose.msra.mxu0 %v494
        %512 = vmatprep.subr.bf16.mxu0 0
        %513 = vmatpush2.bf16.xpose.msra.mxu0 0
        %514 = vmatprep.subr.bf16.mxu0 0
        %515 = vmatpush2.bf16.xpose.msra.mxu0 0
        %516 = vmatprep.subr.bf16.mxu0 0
        %517 = vmatpush2.bf16.xpose.msra.mxu0 0
        %518 = vmatprep.subr.bf16.mxu0 0
        %519 = vmatpush2.bf16.xpose.msra.mxu0 0
        %520 = vmatprep.subr.bf16.mxu0 0
        %521 = vmatpush2.bf16.xpose.msra.mxu0 0
        %522 = vmatprep.subr.bf16.mxu0 0
        %523 = vmatpush2.bf16.xpose.msra.mxu0 0
        %524 = vmatprep.subr.bf16.mxu0 0
        %525 = vmatpush2.bf16.xpose.msra.mxu0 0
        %526 = vmatprep.subr.bf16.mxu0 0
        %527 = vmatpush2.bf16.xpose.msra.mxu0 0
        %528 = vmatprep.mubr.bf16.mxu0 0
        %529 = vmatmul.mubr.bf16.gmra.mxu0 %v491
        %v530 = vpop.f32.mrf.mxu0
        %v531 = vadd.f32 %v414, %v530
        %v532 = vpop.f32.mrf.mxu0
        %v533 = vpop.f32.mrf.mxu0
        %v534 = vpop.f32.mrf.mxu0
        %535 = vdwg.mxu0
        %536 = vrot.lane.b32.xlu0 %v436, 96
        %v537 = vpop.permute.xlu0 %536
        %v539 = vsel %vm441, %v429, 0
        %v542 = vsel %vm441, %v537, 0
        %544 = vmatprep.subr.bf16.mxu0 0
        %545 = vmatpush1.bf16.xpose.msra.mxu0 0
        %546 = vmatprep.subr.bf16.mxu0 0
        %547 = vmatpush1.bf16.xpose.msra.mxu0 0
        %548 = vmatprep.subr.bf16.mxu0 0
        %549 = vmatpush1.bf16.xpose.msra.mxu0 0
        %550 = vmatprep.subr.bf16.mxu0 0
        %551 = vmatpush1.bf16.xpose.msra.mxu0 0
        %552 = vmatprep.subr.bf16.mxu0 0
        %553 = vmatpush1.bf16.xpose.msra.mxu0 0
        %554 = vmatprep.subr.bf16.mxu0 0
        %555 = vmatpush1.bf16.xpose.msra.mxu0 0
        %556 = vmatprep.subr.bf16.mxu0 0
        %557 = vmatpush1.bf16.xpose.msra.mxu0 0
        %558 = vmatprep.subr.bf16.mxu0 0
        %559 = vmatpush1.bf16.xpose.msra.mxu0 %v542
        %560 = vmatprep.subr.bf16.mxu0 0
        %561 = vmatpush2.bf16.xpose.msra.mxu0 0
        %562 = vmatprep.subr.bf16.mxu0 0
        %563 = vmatpush2.bf16.xpose.msra.mxu0 0
        %564 = vmatprep.subr.bf16.mxu0 0
        %565 = vmatpush2.bf16.xpose.msra.mxu0 0
        %566 = vmatprep.subr.bf16.mxu0 0
        %567 = vmatpush2.bf16.xpose.msra.mxu0 0
        %568 = vmatprep.subr.bf16.mxu0 0
        %569 = vmatpush2.bf16.xpose.msra.mxu0 0
        %570 = vmatprep.subr.bf16.mxu0 0
        %571 = vmatpush2.bf16.xpose.msra.mxu0 0
        %572 = vmatprep.subr.bf16.mxu0 0
        %573 = vmatpush2.bf16.xpose.msra.mxu0 0
        %574 = vmatprep.subr.bf16.mxu0 0
        %575 = vmatpush2.bf16.xpose.msra.mxu0 0
        %576 = vmatprep.mubr.bf16.mxu0 0
        %577 = vmatmul.mubr.bf16.gmra.mxu0 %v539
        %v578 = vpop.f32.mrf.mxu0
        %v579 = vadd.f32 %v414, %v578
        %v580 = vpop.f32.mrf.mxu0
        %v581 = vpop.f32.mrf.mxu0
        %v582 = vpop.f32.mrf.mxu0
        %583 = vdwg.mxu0
        %584 = vrot.lane.b32.xlu0 %v438, 96
        %v585 = vpop.permute.xlu0 %584
        %v587 = vsel %vm441, %v431, 0
        %v590 = vsel %vm441, %v585, 0
        %592 = vmatprep.subr.bf16.mxu0 0
        %593 = vmatpush1.bf16.xpose.msra.mxu0 0
        %594 = vmatprep.subr.bf16.mxu0 0
        %595 = vmatpush1.bf16.xpose.msra.mxu0 0
        %596 = vmatprep.subr.bf16.mxu0 0
        %597 = vmatpush1.bf16.xpose.msra.mxu0 0
        %598 = vmatprep.subr.bf16.mxu0 0
        %599 = vmatpush1.bf16.xpose.msra.mxu0 0
        %600 = vmatprep.subr.bf16.mxu0 0
        %601 = vmatpush1.bf16.xpose.msra.mxu0 0
        %602 = vmatprep.subr.bf16.mxu0 0
        %603 = vmatpush1.bf16.xpose.msra.mxu0 0
        %604 = vmatprep.subr.bf16.mxu0 0
        %605 = vmatpush1.bf16.xpose.msra.mxu0 0
        %606 = vmatprep.subr.bf16.mxu0 0
        %607 = vmatpush1.bf16.xpose.msra.mxu0 %v590
        %608 = vmatprep.subr.bf16.mxu0 0
        %609 = vmatpush2.bf16.xpose.msra.mxu0 0
        %610 = vmatprep.subr.bf16.mxu0 0
        %611 = vmatpush2.bf16.xpose.msra.mxu0 0
        %612 = vmatprep.subr.bf16.mxu0 0
        %613 = vmatpush2.bf16.xpose.msra.mxu0 0
        %614 = vmatprep.subr.bf16.mxu0 0
        %615 = vmatpush2.bf16.xpose.msra.mxu0 0
        %616 = vmatprep.subr.bf16.mxu0 0
        %617 = vmatpush2.bf16.xpose.msra.mxu0 0
        %618 = vmatprep.subr.bf16.mxu0 0
        %619 = vmatpush2.bf16.xpose.msra.mxu0 0
        %620 = vmatprep.subr.bf16.mxu0 0
        %621 = vmatpush2.bf16.xpose.msra.mxu0 0
        %622 = vmatprep.subr.bf16.mxu0 0
        %623 = vmatpush2.bf16.xpose.msra.mxu0 0
        %624 = vmatprep.mubr.bf16.mxu0 0
        %625 = vmatmul.mubr.bf16.gmra.mxu0 %v587
        %v626 = vpop.f32.mrf.mxu0
        %v627 = vadd.f32 %v414, %v626
        %v628 = vpop.f32.mrf.mxu0
        %v629 = vpop.f32.mrf.mxu0
        %v630 = vpop.f32.mrf.mxu0
        %631 = vdwg.mxu0
        %v632 = vsel %vm441, %v483, -inf
        %633 = vmax.xlane.f32.xlu0 %v632
        %v634 = vpop.xlane.xlu0 %633
        %v635 = vsel %vm441, %v531, -inf
        %636 = vmax.xlane.f32.xlu0 %v635
        %v637 = vpop.xlane.xlu0 %636
        %v638 = vsel %vm441, %v579, -inf
        %639 = vmax.xlane.f32.xlu0 %v638
        %v640 = vpop.xlane.xlu0 %639
        %v641 = vsel %vm441, %v627, -inf
        %642 = vmax.xlane.f32.xlu0 %v641
        %v643 = vpop.xlane.xlu0 %642
        %v644 = vsub.f32 %v483, %v634
        %v645 = vsub.f32 %v531, %v637
        %v646 = vsub.f32 %v579, %v640
        %v647 = vsub.f32 %v627, %v643
        %v648 = vmul.f32 %v644, 1.442695
        %v649 = vpow.pop %v648
        %v650 = vmul.f32 %v645, 1.442695
        %v651 = vpow.pop %v650
        %v652 = vmul.f32 %v646, 1.442695
        %v653 = vpow.pop %v652
        %v654 = vmul.f32 %v647, 1.442695
        %v655 = vpow.pop %v654
        %v656 = vsel %vm441, %v649, 0.0
        %657 = vadd.xlane.f32.xlu0 %v656
        %v658 = vpop.xlane.xlu0 %657
        %v659 = vsel %vm441, %v651, 0.0
        %660 = vadd.xlane.f32.xlu0 %v659
        %v661 = vpop.xlane.xlu0 %660
        %v662 = vsel %vm441, %v653, 0.0
        %663 = vadd.xlane.f32.xlu0 %v662
        %v664 = vpop.xlane.xlu0 %663
        %v665 = vsel %vm441, %v655, 0.0
        %666 = vadd.xlane.f32.xlu0 %v665
        %v667 = vpop.xlane.xlu0 %666
        %v668 = vrcp.pop %v658
        %v669 = vrcp.pop %v661
        %v670 = vrcp.pop %v664
        %v671 = vrcp.pop %v667
        %v672 = vmul.f32 %v649, %v668
        %v673 = vmul.f32 %v651, %v669
        %v674 = vmul.f32 %v653, %v670
        %v675 = vmul.f32 %v655, %v671
        %v676 = vpack.c.bf16 %v672, %v672
        %v677 = vpack.c.bf16 %v673, %v673
        %v678 = vpack.c.bf16 %v674, %v674
        %v679 = vpack.c.bf16 %v675, %v675
        %680 = vrot.lane.b32.xlu0 %v424, 64
        %v681 = vpop.permute.xlu0 %680
        %v683 = vsel %vm441, %v676, 0
        %vm685 = vcmask 1043456
        %v687 = vsel %vm685, %v681, 0
        %689 = vmatprep.subr.bf16.mxu0 0
        %690 = vmatpush1.bf16.msra.mxu0 0
        %691 = vmatprep.subr.bf16.mxu0 0
        %692 = vmatpush1.bf16.msra.mxu0 0
        %693 = vmatprep.subr.bf16.mxu0 0
        %694 = vmatpush1.bf16.msra.mxu0 0
        %695 = vmatprep.subr.bf16.mxu0 0
        %696 = vmatpush1.bf16.msra.mxu0 0
        %697 = vmatprep.subr.bf16.mxu0 0
        %698 = vmatpush1.bf16.msra.mxu0 0
        %699 = vmatprep.subr.bf16.mxu0 0
        %700 = vmatpush1.bf16.msra.mxu0 0
        %701 = vmatprep.subr.bf16.mxu0 0
        %702 = vmatpush1.bf16.msra.mxu0 0
        %703 = vmatprep.subr.bf16.mxu0 0
        %704 = vmatpush1.bf16.msra.mxu0 %v687
        %705 = vmatprep.subr.bf16.mxu0 0
        %706 = vmatpush2.bf16.msra.mxu0 0
        %707 = vmatprep.subr.bf16.mxu0 0
        %708 = vmatpush2.bf16.msra.mxu0 0
        %709 = vmatprep.subr.bf16.mxu0 0
        %710 = vmatpush2.bf16.msra.mxu0 0
        %711 = vmatprep.subr.bf16.mxu0 0
        %712 = vmatpush2.bf16.msra.mxu0 0
        %713 = vmatprep.subr.bf16.mxu0 0
        %714 = vmatpush2.bf16.msra.mxu0 0
        %715 = vmatprep.subr.bf16.mxu0 0
        %716 = vmatpush2.bf16.msra.mxu0 0
        %717 = vmatprep.subr.bf16.mxu0 0
        %718 = vmatpush2.bf16.msra.mxu0 0
        %719 = vmatprep.subr.bf16.mxu0 0
        %720 = vmatpush2.bf16.msra.mxu0 0
        %721 = vmatprep.mubr.bf16.mxu0 0
        %722 = vmatmul.mubr.bf16.gmra.mxu0 %v683
        %v723 = vpop.f32.mrf.mxu0
        %v724 = vadd.f32 0.0, %v723
        %v725 = vpop.f32.mrf.mxu0
        %v726 = vpop.f32.mrf.mxu0
        %v727 = vpop.f32.mrf.mxu0
        %728 = vdwg.mxu0
        %729 = vrot.lane.b32.xlu0 %v434, 64
        %v730 = vpop.permute.xlu0 %729
        %v732 = vsel %vm441, %v677, 0
        %v735 = vsel %vm685, %v730, 0
        %737 = vmatprep.subr.bf16.mxu0 0
        %738 = vmatpush1.bf16.msra.mxu0 0
        %739 = vmatprep.subr.bf16.mxu0 0
        %740 = vmatpush1.bf16.msra.mxu0 0
        %741 = vmatprep.subr.bf16.mxu0 0
        %742 = vmatpush1.bf16.msra.mxu0 0
        %743 = vmatprep.subr.bf16.mxu0 0
        %744 = vmatpush1.bf16.msra.mxu0 0
        %745 = vmatprep.subr.bf16.mxu0 0
        %746 = vmatpush1.bf16.msra.mxu0 0
        %747 = vmatprep.subr.bf16.mxu0 0
        %748 = vmatpush1.bf16.msra.mxu0 0
        %749 = vmatprep.subr.bf16.mxu0 0
        %750 = vmatpush1.bf16.msra.mxu0 0
        %751 = vmatprep.subr.bf16.mxu0 0
        %752 = vmatpush1.bf16.msra.mxu0 %v735
        %753 = vmatprep.subr.bf16.mxu0 0
        %754 = vmatpush2.bf16.msra.mxu0 0
        %755 = vmatprep.subr.bf16.mxu0 0
        %756 = vmatpush2.bf16.msra.mxu0 0
        %757 = vmatprep.subr.bf16.mxu0 0
        %758 = vmatpush2.bf16.msra.mxu0 0
        %759 = vmatprep.subr.bf16.mxu0 0
        %760 = vmatpush2.bf16.msra.mxu0 0
        %761 = vmatprep.subr.bf16.mxu0 0
        %762 = vmatpush2.bf16.msra.mxu0 0
        %763 = vmatprep.subr.bf16.mxu0 0
        %764 = vmatpush2.bf16.msra.mxu0 0
        %765 = vmatprep.subr.bf16.mxu0 0
        %766 = vmatpush2.bf16.msra.mxu0 0
        %767 = vmatprep.subr.bf16.mxu0 0
        %768 = vmatpush2.bf16.msra.mxu0 0
        %769 = vmatprep.mubr.bf16.mxu0 0
        %770 = vmatmul.mubr.bf16.gmra.mxu0 %v732
        %v771 = vpop.f32.mrf.mxu0
        %v772 = vadd.f32 0.0, %v771
        %v773 = vpop.f32.mrf.mxu0
        %v774 = vpop.f32.mrf.mxu0
        %v775 = vpop.f32.mrf.mxu0
        %776 = vdwg.mxu0
        %777 = vrot.lane.b32.xlu0 %v436, 64
        %v778 = vpop.permute.xlu0 %777
        %v780 = vsel %vm441, %v678, 0
        %v783 = vsel %vm685, %v778, 0
        %785 = vmatprep.subr.bf16.mxu0 0
        %786 = vmatpush1.bf16.msra.mxu0 0
        %787 = vmatprep.subr.bf16.mxu0 0
        %788 = vmatpush1.bf16.msra.mxu0 0
        %789 = vmatprep.subr.bf16.mxu0 0
        %790 = vmatpush1.bf16.msra.mxu0 0
        %791 = vmatprep.subr.bf16.mxu0 0
        %792 = vmatpush1.bf16.msra.mxu0 0
        %793 = vmatprep.subr.bf16.mxu0 0
        %794 = vmatpush1.bf16.msra.mxu0 0
        %795 = vmatprep.subr.bf16.mxu0 0
        %796 = vmatpush1.bf16.msra.mxu0 0
        %797 = vmatprep.subr.bf16.mxu0 0
        %798 = vmatpush1.bf16.msra.mxu0 0
        %799 = vmatprep.subr.bf16.mxu0 0
        %800 = vmatpush1.bf16.msra.mxu0 %v783
        %801 = vmatprep.subr.bf16.mxu0 0
        %802 = vmatpush2.bf16.msra.mxu0 0
        %803 = vmatprep.subr.bf16.mxu0 0
        %804 = vmatpush2.bf16.msra.mxu0 0
        %805 = vmatprep.subr.bf16.mxu0 0
        %806 = vmatpush2.bf16.msra.mxu0 0
        %807 = vmatprep.subr.bf16.mxu0 0
        %808 = vmatpush2.bf16.msra.mxu0 0
        %809 = vmatprep.subr.bf16.mxu0 0
        %810 = vmatpush2.bf16.msra.mxu0 0
        %811 = vmatprep.subr.bf16.mxu0 0
        %812 = vmatpush2.bf16.msra.mxu0 0
        %813 = vmatprep.subr.bf16.mxu0 0
        %814 = vmatpush2.bf16.msra.mxu0 0
        %815 = vmatprep.subr.bf16.mxu0 0
        %816 = vmatpush2.bf16.msra.mxu0 0
        %817 = vmatprep.mubr.bf16.mxu0 0
        %818 = vmatmul.mubr.bf16.gmra.mxu0 %v780
        %v819 = vpop.f32.mrf.mxu0
        %v820 = vadd.f32 0.0, %v819
        %v821 = vpop.f32.mrf.mxu0
        %v822 = vpop.f32.mrf.mxu0
        %v823 = vpop.f32.mrf.mxu0
        %824 = vdwg.mxu0
        %825 = vrot.lane.b32.xlu0 %v438, 64
        %v826 = vpop.permute.xlu0 %825
        %v828 = vsel %vm441, %v679, 0
        %v831 = vsel %vm685, %v826, 0
        %833 = vmatprep.subr.bf16.mxu0 0
        %834 = vmatpush1.bf16.msra.mxu0 0
        %835 = vmatprep.subr.bf16.mxu0 0
        %836 = vmatpush1.bf16.msra.mxu0 0
        %837 = vmatprep.subr.bf16.mxu0 0
        %838 = vmatpush1.bf16.msra.mxu0 0
        %839 = vmatprep.subr.bf16.mxu0 0
        %840 = vmatpush1.bf16.msra.mxu0 0
        %841 = vmatprep.subr.bf16.mxu0 0
        %842 = vmatpush1.bf16.msra.mxu0 0
        %843 = vmatprep.subr.bf16.mxu0 0
        %844 = vmatpush1.bf16.msra.mxu0 0
        %845 = vmatprep.subr.bf16.mxu0 0
        %846 = vmatpush1.bf16.msra.mxu0 0
        %847 = vmatprep.subr.bf16.mxu0 0
        %848 = vmatpush1.bf16.msra.mxu0 %v831
        %849 = vmatprep.subr.bf16.mxu0 0
        %850 = vmatpush2.bf16.msra.mxu0 0
        %851 = vmatprep.subr.bf16.mxu0 0
        %852 = vmatpush2.bf16.msra.mxu0 0
        %853 = vmatprep.subr.bf16.mxu0 0
        %854 = vmatpush2.bf16.msra.mxu0 0
        %855 = vmatprep.subr.bf16.mxu0 0
        %856 = vmatpush2.bf16.msra.mxu0 0
        %857 = vmatprep.subr.bf16.mxu0 0
        %858 = vmatpush2.bf16.msra.mxu0 0
        %859 = vmatprep.subr.bf16.mxu0 0
        %860 = vmatpush2.bf16.msra.mxu0 0
        %861 = vmatprep.subr.bf16.mxu0 0
        %862 = vmatpush2.bf16.msra.mxu0 0
        %863 = vmatprep.subr.bf16.mxu0 0
        %864 = vmatpush2.bf16.msra.mxu0 0
        %865 = vmatprep.mubr.bf16.mxu0 0
        %866 = vmatmul.mubr.bf16.gmra.mxu0 %v828
        %v867 = vpop.f32.mrf.mxu0
        %v868 = vadd.f32 0.0, %v867
        %v869 = vpop.f32.mrf.mxu0
        %v870 = vpop.f32.mrf.mxu0
        %v871 = vpop.f32.mrf.mxu0
        %872 = vdwg.mxu0
        %v873 = vpack.c.bf16 %v724, %v724
        %v874 = vpack.c.bf16 %v772, %v772
        %v875 = vpack.c.bf16 %v820, %v820
        %v876 = vpack.c.bf16 %v868, %v868
        %v877 = vpack.c.bf16 %v415, %v415
        %v878 = vpack.c.bf16 %v416, %v416
        %v879 = vpack.c.bf16 %v417, %v417
        %v880 = vpack.c.bf16 %v418, %v418
        %v882 = vsel %vm441, %v873, 0
        %v885 = vsel %vm685, %v877, 0
        %887 = vmatprep.subr.bf16.mxu0 0
        %888 = vmatpush1.bf16.msra.mxu0 0
        %889 = vmatprep.subr.bf16.mxu0 0
        %890 = vmatpush1.bf16.msra.mxu0 0
        %891 = vmatprep.subr.bf16.mxu0 0
        %892 = vmatpush1.bf16.msra.mxu0 0
        %893 = vmatprep.subr.bf16.mxu0 0
        %894 = vmatpush1.bf16.msra.mxu0 0
        %895 = vmatprep.subr.bf16.mxu0 0
        %896 = vmatpush1.bf16.msra.mxu0 0
        %897 = vmatprep.subr.bf16.mxu0 0
        %898 = vmatpush1.bf16.msra.mxu0 0
        %899 = vmatprep.subr.bf16.mxu0 0
        %900 = vmatpush1.bf16.msra.mxu0 0
        %901 = vmatprep.subr.bf16.mxu0 0
        %902 = vmatpush1.bf16.msra.mxu0 %v885
        %903 = vmatprep.subr.bf16.mxu0 0
        %904 = vmatpush2.bf16.msra.mxu0 0
        %905 = vmatprep.subr.bf16.mxu0 0
        %906 = vmatpush2.bf16.msra.mxu0 0
        %907 = vmatprep.subr.bf16.mxu0 0
        %908 = vmatpush2.bf16.msra.mxu0 0
        %909 = vmatprep.subr.bf16.mxu0 0
        %910 = vmatpush2.bf16.msra.mxu0 0
        %911 = vmatprep.subr.bf16.mxu0 0
        %912 = vmatpush2.bf16.msra.mxu0 0
        %913 = vmatprep.subr.bf16.mxu0 0
        %914 = vmatpush2.bf16.msra.mxu0 0
        %915 = vmatprep.subr.bf16.mxu0 0
        %916 = vmatpush2.bf16.msra.mxu0 0
        %917 = vmatprep.subr.bf16.mxu0 0
        %918 = vmatpush2.bf16.msra.mxu0 0
        %919 = vmatprep.mubr.bf16.mxu0 0
        %920 = vmatmul.mubr.bf16.gmra.mxu0 %v882
        %v921 = vpop.f32.mrf.mxu0
        %v922 = vadd.f32 0.0, %v921
        %v923 = vpop.f32.mrf.mxu0
        %v924 = vpop.f32.mrf.mxu0
        %v925 = vpop.f32.mrf.mxu0
        %926 = vdwg.mxu0
        %v928 = vsel %vm441, %v874, 0
        %v931 = vsel %vm685, %v878, 0
        %933 = vmatprep.subr.bf16.mxu0 0
        %934 = vmatpush1.bf16.msra.mxu0 0
        %935 = vmatprep.subr.bf16.mxu0 0
        %936 = vmatpush1.bf16.msra.mxu0 0
        %937 = vmatprep.subr.bf16.mxu0 0
        %938 = vmatpush1.bf16.msra.mxu0 0
        %939 = vmatprep.subr.bf16.mxu0 0
        %940 = vmatpush1.bf16.msra.mxu0 0
        %941 = vmatprep.subr.bf16.mxu0 0
        %942 = vmatpush1.bf16.msra.mxu0 0
        %943 = vmatprep.subr.bf16.mxu0 0
        %944 = vmatpush1.bf16.msra.mxu0 0
        %945 = vmatprep.subr.bf16.mxu0 0
        %946 = vmatpush1.bf16.msra.mxu0 0
        %947 = vmatprep.subr.bf16.mxu0 0
        %948 = vmatpush1.bf16.msra.mxu0 %v931
        %949 = vmatprep.subr.bf16.mxu0 0
        %950 = vmatpush2.bf16.msra.mxu0 0
        %951 = vmatprep.subr.bf16.mxu0 0
        %952 = vmatpush2.bf16.msra.mxu0 0
        %953 = vmatprep.subr.bf16.mxu0 0
        %954 = vmatpush2.bf16.msra.mxu0 0
        %955 = vmatprep.subr.bf16.mxu0 0
        %956 = vmatpush2.bf16.msra.mxu0 0
        %957 = vmatprep.subr.bf16.mxu0 0
        %958 = vmatpush2.bf16.msra.mxu0 0
        %959 = vmatprep.subr.bf16.mxu0 0
        %960 = vmatpush2.bf16.msra.mxu0 0
        %961 = vmatprep.subr.bf16.mxu0 0
        %962 = vmatpush2.bf16.msra.mxu0 0
        %963 = vmatprep.subr.bf16.mxu0 0
        %964 = vmatpush2.bf16.msra.mxu0 0
        %965 = vmatprep.mubr.bf16.mxu0 0
        %966 = vmatmul.mubr.bf16.gmra.mxu0 %v928
        %v967 = vpop.f32.mrf.mxu0
        %v968 = vadd.f32 0.0, %v967
        %v969 = vpop.f32.mrf.mxu0
        %v970 = vpop.f32.mrf.mxu0
        %v971 = vpop.f32.mrf.mxu0
        %972 = vdwg.mxu0
        %v974 = vsel %vm441, %v875, 0
        %v977 = vsel %vm685, %v879, 0
        %979 = vmatprep.subr.bf16.mxu0 0
        %980 = vmatpush1.bf16.msra.mxu0 0
        %981 = vmatprep.subr.bf16.mxu0 0
        %982 = vmatpush1.bf16.msra.mxu0 0
        %983 = vmatprep.subr.bf16.mxu0 0
        %984 = vmatpush1.bf16.msra.mxu0 0
        %985 = vmatprep.subr.bf16.mxu0 0
        %986 = vmatpush1.bf16.msra.mxu0 0
        %987 = vmatprep.subr.bf16.mxu0 0
        %988 = vmatpush1.bf16.msra.mxu0 0
        %989 = vmatprep.subr.bf16.mxu0 0
        %990 = vmatpush1.bf16.msra.mxu0 0
        %991 = vmatprep.subr.bf16.mxu0 0
        %992 = vmatpush1.bf16.msra.mxu0 0
        %993 = vmatprep.subr.bf16.mxu0 0
        %994 = vmatpush1.bf16.msra.mxu0 %v977
        %995 = vmatprep.subr.bf16.mxu0 0
        %996 = vmatpush2.bf16.msra.mxu0 0
        %997 = vmatprep.subr.bf16.mxu0 0
        %998 = vmatpush2.bf16.msra.mxu0 0
        %999 = vmatprep.subr.bf16.mxu0 0
        %1000 = vmatpush2.bf16.msra.mxu0 0
        %1001 = vmatprep.subr.bf16.mxu0 0
        %1002 = vmatpush2.bf16.msra.mxu0 0
        %1003 = vmatprep.subr.bf16.mxu0 0
        %1004 = vmatpush2.bf16.msra.mxu0 0
        %1005 = vmatprep.subr.bf16.mxu0 0
        %1006 = vmatpush2.bf16.msra.mxu0 0
        %1007 = vmatprep.subr.bf16.mxu0 0
        %1008 = vmatpush2.bf16.msra.mxu0 0
        %1009 = vmatprep.subr.bf16.mxu0 0
        %1010 = vmatpush2.bf16.msra.mxu0 0
        %1011 = vmatprep.mubr.bf16.mxu0 0
        %1012 = vmatmul.mubr.bf16.gmra.mxu0 %v974
        %v1013 = vpop.f32.mrf.mxu0
        %v1014 = vadd.f32 0.0, %v1013
        %v1015 = vpop.f32.mrf.mxu0
        %v1016 = vpop.f32.mrf.mxu0
        %v1017 = vpop.f32.mrf.mxu0
        %1018 = vdwg.mxu0
        %v1020 = vsel %vm441, %v876, 0
        %v1023 = vsel %vm685, %v880, 0
        %1025 = vmatprep.subr.bf16.mxu0 0
        %1026 = vmatpush1.bf16.msra.mxu0 0
        %1027 = vmatprep.subr.bf16.mxu0 0
        %1028 = vmatpush1.bf16.msra.mxu0 0
        %1029 = vmatprep.subr.bf16.mxu0 0
        %1030 = vmatpush1.bf16.msra.mxu0 0
        %1031 = vmatprep.subr.bf16.mxu0 0
        %1032 = vmatpush1.bf16.msra.mxu0 0
        %1033 = vmatprep.subr.bf16.mxu0 0
        %1034 = vmatpush1.bf16.msra.mxu0 0
        %1035 = vmatprep.subr.bf16.mxu0 0
        %1036 = vmatpush1.bf16.msra.mxu0 0
        %1037 = vmatprep.subr.bf16.mxu0 0
        %1038 = vmatpush1.bf16.msra.mxu0 0
        %1039 = vmatprep.subr.bf16.mxu0 0
        %1040 = vmatpush1.bf16.msra.mxu0 %v1023
        %1041 = vmatprep.subr.bf16.mxu0 0
        %1042 = vmatpush2.bf16.msra.mxu0 0
        %1043 = vmatprep.subr.bf16.mxu0 0
        %1044 = vmatpush2.bf16.msra.mxu0 0
        %1045 = vmatprep.subr.bf16.mxu0 0
        %1046 = vmatpush2.bf16.msra.mxu0 0
        %1047 = vmatprep.subr.bf16.mxu0 0
        %1048 = vmatpush2.bf16.msra.mxu0 0
        %1049 = vmatprep.subr.bf16.mxu0 0
        %1050 = vmatpush2.bf16.msra.mxu0 0
        %1051 = vmatprep.subr.bf16.mxu0 0
        %1052 = vmatpush2.bf16.msra.mxu0 0
        %1053 = vmatprep.subr.bf16.mxu0 0
        %1054 = vmatpush2.bf16.msra.mxu0 0
        %1055 = vmatprep.subr.bf16.mxu0 0
        %1056 = vmatpush2.bf16.msra.mxu0 0
        %1057 = vmatprep.mubr.bf16.mxu0 0
        %1058 = vmatmul.mubr.bf16.gmra.mxu0 %v1020
        %v1059 = vpop.f32.mrf.mxu0
        %v1060 = vadd.f32 0.0, %v1059
        %v1061 = vpop.f32.mrf.mxu0
        %v1062 = vpop.f32.mrf.mxu0
        %v1063 = vpop.f32.mrf.mxu0
        %1064 = vdwg.mxu0
        %v1065 = vsel %vm369, %v922, 0.0
        %v1066 = vsel %vm369, %v968, 0.0
        %v1067 = vadd.f32 %v1065, %v1066
        %v1068 = vsel %vm369, %v1014, 0.0
        %v1069 = vadd.f32 %v1067, %v1068
        %v1070 = vsel %vm369, %v1060, 0.0
        %v1071 = vadd.f32 %v1069, %v1070
        %v1073 = vlaneseq
        %v1074 = vshrl.u32 %v1073, 7
        %v1075 = vsub.s32 0, %v1074
        %v1076 = vrot.slane %v419, %v1075
        %v1078 = vadd.f32 %v1071, %v1076
        %v1079 = vadd.f32 %v1078, %v361
        %v1080 = vsel %vm369, %v1079, 0.0
        %1081 = vadd.xlane.f32.xlu0 %v1080
        %v1082 = vpop.xlane.xlu0 %1081
        %v1083 = vrcp.pop 32.0
        %v1084 = vmul.f32 %v1082, %v1083
        %v1085 = vsub.f32 %v1079, %v1084
        %v1086 = vmul.f32 %v1085, %v1085
        %v1087 = vsel %vm369, %v1086, 0.0
        %1088 = vadd.xlane.f32.xlu0 %v1087
        %v1089 = vpop.xlane.xlu0 %1088
        %v1090 = vmul.f32 %v1089, %v1083
        %v1091 = vadd.f32 %v1090, 1e-05
        %v1092 = vrsqrt.pop %v1091
        %v1093 = vmul.f32 %v1085, %v1092
        %v1095 = vlaneseq
        %v1096 = vshrl.u32 %v1095, 7
        %v1097 = vsub.s32 0, %v1096
        %v1098 = vrot.slane %v420, %v1097
        %v1100 = vmul.f32 %v1093, %v1098
        %v1102 = vlaneseq
        %v1103 = vshrl.u32 %v1102, 7
        %v1104 = vsub.s32 0, %v1103
        %v1105 = vrot.slane %v421, %v1104
        %v1107 = vadd.f32 %v1100, %v1105
        %1108 = vst.msk [vmem:[%s359] sm:$0xff] %vm369, %v1107
        %s1109 = sand.u32 %s193, 1
        %s1110 = scalar_lea.sflag [#allocation4], %s1109
        %s1111 = sand.u32 %s193, 1
        %s1112 = smul.addr %s1111, 8
        %s1113 = scalar_lea.vmem [#allocation10], %s1112
        // Predicated region
        $region65: #{tpu_custom_call.1} parent=47 // pred_check
          %p1114 = pneg %p203
        $region66: #{tpu_custom_call.1} parent=47 // pred_check_branch
          %1116 = sbr.rel (%p1114) target = $region68
        $region67: #{tpu_custom_call.1} parent=47 // pred_region
          %s1118 = ssub.s32 128, 128
          %1119 = vsyncadd %s1110, %s1118
          %s1120 = smul.addr %s28, 128
          %s1121 = scalar_lea.hbm %s7, %s1120
          %s1123 = sshll.u32 %s1113, 4
          %s1124 = int_to_ptr.vmem [resolvable:$true] %s1123
          %1126 = dma.vmem_to_hbm [thread:$0]  %s1124, 128, %s1121, %s1110
        $region68: #{tpu_custom_call.1} parent=47 // pred_fallthru
          _
      $region48: #{tpu_custom_call.1} parent=5 // pred_fallthru
        _
      %p1127 = scmp.le.s32.totalorder 2, %s23
      // Predicated region
      $region69: #{tpu_custom_call.1} parent=5 // pred_check
        %p1128 = pneg %p1127
      $region70: #{tpu_custom_call.1} parent=5 // pred_check_branch
        %1130 = sbr.rel (%p1128) target = $region72
      $region71: #{tpu_custom_call.1} parent=5 // pred_region
        %s1131 = ssub.s32 %s23, 2
        // Predicated region
        $region73: #{tpu_custom_call.1} parent=71 // pred_check
          %p1132 = pneg %p209
        $region74: #{tpu_custom_call.1} parent=71 // pred_check_branch
          %1134 = sbr.rel (%p1132) target = $region76
        $region75: #{tpu_custom_call.1} parent=71 // pred_region
          %s1135 = sand.u32 %s194, 1
          %s1136 = scalar_lea.sflag [#allocation4], %s1135
          %s1137 = sand.u32 %s194, 1
          %s1138 = smul.addr %s1137, 8
          %s1139 = scalar_lea.vmem [#allocation10], %s1138
          %1140 = dma.done %s1136, 128
        $region76: #{tpu_custom_call.1} parent=71 // pred_fallthru
          _
      $region72: #{tpu_custom_call.1} parent=5 // pred_fallthru
        _
    $region6: #{tpu_custom_call.1} parent=1 // loop_footer
      %s27 = sadd.s32 1, %s23
    $region7: #{tpu_custom_call.1} parent=1 // loop_footer_branch
      %22 = sbr.rel target = $region3
    $region8: #{tpu_custom_call.1} parent=1 // loop_exit
      _
    %1141 = vsyncpa [#allocation3], 1
    %s1142 = scalar_lea.sflag [#allocation3], 1
    %1143 = vsyncpa %s1142, 1
    %1144 = vsyncpa [#allocation6], 1
    %s1145 = scalar_lea.sflag [#allocation6], 1
    %1146 = vsyncpa %s1145, 1
    %1147 = vsyncpa [#allocation9], 1
    %1148 = vsyncpa [#allocation4], 1
    %s1149 = scalar_lea.sflag [#allocation4], 1
    %1150 = vsyncpa %s1149, 1

</llo_original>
